<compile_context>
chip_gen: v6e
topology: v6e:2x2x1
jax: 0.10.0
libtpu: 0.0.40
codegen_flags: <defaults>
</compile_context>

<pallas_src>
import functools

import numpy as np

import jax
import jax.numpy as jnp
from jax.experimental import pallas as pl
from jax.experimental.pallas import tpu as pltpu

_BN_EPS = 1e-5
_GP = 8          # per-image row group in the folded contraction (one sublane tile)
_LANES = 128


def _round_up(x, m):
    return ((x + m - 1) // m) * m


def _pick_imgs_per_step(n, c, h, w, budget_bytes=2 << 20):
    """Images per grid step: divisor of n, <= 8, fits the VMEM budget, keeps >=2 steps."""
    per_img = c * h * w * 4
    cap = int(max(1, min(_GP, budget_bytes // max(per_img, 1))))
    g = 1
    for cand in range(1, cap + 1):
        if n % cand == 0 and (n // cand) >= 2:
            g = cand
    return g


def _lattice_mask(size, out_size):
    """mask[p, k] = 1 iff padded position p+3 equals 2*o + k for some o in [0, out_size)."""
    p = np.arange(size)[:, None]
    k = np.arange(7)[None, :]
    t = p + 3 - k
    return ((t >= 0) & (t % 2 == 0) & (t // 2 < out_size)).astype(np.float32)


# ---------------------------------------------------------------------------
# Fused kernel: conv1 (+folded data_bn) + global average pool + fc head,
# computed directly from the raw image via lattice-mask matmuls (no im2col).
# ---------------------------------------------------------------------------
def _fused_head_kernel(x_ref, colm_ref, rmask_ref, wbig_ref, beff_ref, o_ref, *, ck):
    # x_ref:     (G*C*H, W)        raw image rows for G images (f32)
    # colm_ref:  (W, 128)          column-lattice mask, lanes 0..6 hold kx
    # rmask_ref: (ck*8, G*C*H)     block-diagonal row-lattice mask (rows i*8+g)
    # wbig_ref:  (ck, 128, NC_pad) folded conv1*BN*1/S*fc weights
    # beff_ref:  (1, NC_pad)       folded bias (fc_b + BN-bias edge terms)
    # o_ref:     (8, NC_pad)       logits for up to 8 images (rows >= G unused)
    cred = jnp.dot(x_ref[...], colm_ref[...], preferred_element_type=jnp.float32)
    rsum = jnp.dot(rmask_ref[...], cred, preferred_element_type=jnp.float32)
    acc = jnp.zeros(o_ref.shape, jnp.float32)
    for i in range(ck):      # ck = C*8 (static); tiny (8,128)@(128,NC_pad) matmuls
        acc = acc + jnp.dot(rsum[i * _GP:(i + 1) * _GP, :], wbig_ref[i],
                            preferred_element_type=jnp.float32)
    o_ref[...] = acc + beff_ref[...]


def fused_conv_pool_fc(x_imgs, colmask, rmask, wbig, beff, *, imgs_per_step):
    """x_imgs: (N, C, H, W) f32 -> (N, NC_pad) f32 logits (padded classes are zero)."""
    n, c, h, w = x_imgs.shape
    g = imgs_per_step
    steps = n // g
    ck, _, nc_pad = wbig.shape
    x3 = x_imgs.reshape(steps, g * c * h, w)          # contiguous reshape, no copy

    kernel = functools.partial(_fused_head_kernel, ck=ck)
    out = pl.pallas_call(
        kernel,
        out_shape=jax.ShapeDtypeStruct((steps, _GP, nc_pad), jnp.float32),
        grid=(steps,),
        in_specs=[
            pl.BlockSpec((None, g * c * h, w), lambda s: (s, 0, 0)),
            pl.BlockSpec((w, _LANES), lambda s: (0, 0)),
            pl.BlockSpec((ck * _GP, g * c * h), lambda s: (0, 0)),
            pl.BlockSpec((ck, _LANES, nc_pad), lambda s: (0, 0, 0)),
            pl.BlockSpec((1, nc_pad), lambda s: (0, 0)),
        ],
        out_specs=pl.BlockSpec((None, _GP, nc_pad), lambda s: (s, 0, 0)),
        compiler_params=pltpu.CompilerParams(
            dimension_semantics=("parallel",),
            vmem_limit_bytes=32 * 1024 * 1024),
    )(x3, colmask, rmask, wbig, beff)
    return out[:, :g, :].reshape(n, nc_pad)


# ---------------------------------------------------------------------------
# Model wrapper
# ---------------------------------------------------------------------------
class PallasModel:
    """Pallas equivalent of Model(num_class, num_segments, representation='mv',
    base_model='resnet152'): data_bn folded into conv1, conv1+pool+fc fused and
    algebraically folded into one image-streaming Pallas kernel."""

    def __init__(self, num_class, num_segments, representation="mv", key=None):
        assert representation in ("mv", "residual", "iframe")
        self.num_class = num_class
        self.num_segments = num_segments
        self.representation = representation
        c_in = 2 if representation == "mv" else 3
        self.c_in = c_in
        conv_out = 64

        key = key if key is not None else jax.random.PRNGKey(0)
        k1, k2, k3, k4, k5 = jax.random.split(key, 5)
        # data_bn (BatchNorm2d(c_in)) parameters / running stats (eval-mode BN).
        self.bn_gamma = 1.0 + 0.1 * jax.random.normal(k1, (c_in,), jnp.float32)
        self.bn_beta = 0.1 * jax.random.normal(k2, (c_in,), jnp.float32)
        self.bn_mean = 0.05 * jax.random.normal(k3, (c_in,), jnp.float32)
        self.bn_var = jnp.abs(1.0 + 0.1 * jax.random.normal(k4, (c_in,), jnp.float32))
        kc, kf, kb = jax.random.split(k5, 3)
        # conv1: Conv2d(c_in, 64, 7, stride=2, padding=3, bias=False)
        self.conv1_w = 0.05 * jax.random.normal(kc, (conv_out, c_in, 7, 7), jnp.float32)
        # fc: Linear(feat_dim, num_class)
        # TODO(synk): real resnet152 fc consumes 2048-d trunk features (trunk omitted).
        self.fc_w = 0.05 * jax.random.normal(kf, (conv_out, num_class), jnp.float32)
        self.fc_b = 0.05 * jax.random.normal(kb, (num_class,), jnp.float32)

        # ---- one-time weight folds (shape-independent part) ----
        if representation in ("mv", "residual"):
            self._bn_scale = self.bn_gamma / jnp.sqrt(self.bn_var + _BN_EPS)
            self._bn_bias = self.bn_beta - self.bn_mean * self._bn_scale
        else:
            self._bn_scale = jnp.ones((c_in,), jnp.float32)
            self._bn_bias = jnp.zeros((c_in,), jnp.float32)
        # wf[c,ky,kx,m] = sum_o conv1_w[o,c,ky,kx] * fc_w[o,m]
        self._wf = jnp.einsum("ocyx,om->cyxm", self.conv1_w, self.fc_w)
        self._wf_scaled = self._wf * self._bn_scale[:, None, None, None]

        self.nc_pad = _round_up(num_class, _LANES)
        self.ck = c_in * _GP

        self._jit_forward = jax.jit(self._forward)

    def _forward(self, x_btchw):
        # input.view((-1,) + input.size()[-3:])
        x = x_btchw.reshape((-1,) + x_btchw.shape[-3:])                  # (N, C, H, W)
        n, c, h, w = x.shape
        oh = (h + 2 * 3 - 7) // 2 + 1
        ow = (w + 2 * 3 - 7) // 2 + 1
        inv_s = 1.0 / float(oh * ow)
        g = _pick_imgs_per_step(n, c, h, w)

        # --- trace-time (numpy) lattice masks: which image rows/cols feed tap ky/kx ---
        rowmask = _lattice_mask(h, oh)                                   # (H, 7)
        colmask = _lattice_mask(w, ow)                                   # (W, 7)
        cnt_r = rowmask.sum(axis=0)                                      # (7,)
        cnt_s = colmask.sum(axis=0)                                      # (7,)
        colmask_pad = np.zeros((w, _LANES), np.float32)
        colmask_pad[:, :7] = colmask
        rmask = np.zeros((self.ck * _GP, g * c * h), np.float32)
        for gg in range(g):
            for ch in range(c):
                base = (gg * c + ch) * h
                for ky in range(7):
                    rmask[(ch * _GP + ky) * _GP + gg, base:base + h] = rowmask[:, ky]

        # --- fold BN scale, 1/S and fc into conv weights; fold BN bias into the bias ---
        w_eff = inv_s * self._wf_scaled                                  # (C, 7, 7, NC)
        wbig = jnp.pad(w_eff, ((0, 0), (0, 1), (0, _LANES - 7),
                               (0, self.nc_pad - self.num_class)))
        wbig = wbig.reshape(self.ck, _LANES, self.nc_pad)
        beff = self.fc_b + inv_s * jnp.einsum(
            "c,y,x,cyxm->m", self._bn_bias, jnp.asarray(cnt_r), jnp.asarray(cnt_s),
            self._wf)
        beff = jnp.pad(beff, (0, self.nc_pad - self.num_class)).reshape(1, self.nc_pad)

        out = fused_conv_pool_fc(x, colmask_pad, rmask, wbig, beff, imgs_per_step=g)
        return out[:, :self.num_class]

    def __call__(self, x_btchw):
        return self._jit_forward(x_btchw)


def _reference_forward(model, x_btchw):
    """Pure-JAX f32 reference of the same (trunk-omitted) forward pass."""
    x = x_btchw.reshape((-1,) + x_btchw.shape[-3:])
    if model.representation in ("mv", "residual"):
        s = model.bn_gamma / jnp.sqrt(model.bn_var + _BN_EPS)
        b = model.bn_beta - model.bn_mean * s
        x = x * s[None, :, None, None] + b[None, :, None, None]
    y = jax.lax.conv_general_dilated(
        x, model.conv1_w, window_strides=(2, 2), padding=[(3, 3), (3, 3)],
        dimension_numbers=("NCHW", "OIHW", "NCHW"))
    feat = y.mean(axis=(2, 3))
    return feat @ model.fc_w + model.fc_b[None, :]


if __name__ == "__main__":
    key = jax.random.PRNGKey(0)
    k_in, k_params = jax.random.split(key)
    B, T, C, H, W = 2, 3, 2, 16, 16    # batch=2, num_segments=3, 'mv' => 2 channels
    num_class = 10
    x = jax.random.normal(k_in, (B, T, C, H, W), jnp.float32)
    model = PallasModel(num_class=num_class, num_segments=T, representation="mv",
                        key=k_params)
    out = jax.block_until_ready(model(x))
    assert out.shape == (B * T, num_class)
    assert bool(jnp.all(jnp.isfinite(out)))
    ref = _reference_forward(model, x)
    assert jnp.allclose(out, ref, atol=5e-2, rtol=5e-2), \
        float(jnp.max(jnp.abs(out - ref)))
    print("KERNEL_OK")
</pallas_src>

<mosaic_0001>
module attributes {stable_mosaic.version = 11 : i64} {
  func.func @_fused_head_kernel(%arg0: i32, %arg1: memref<1x96x16xf32, #tpu.memory_space<vmem>>, %arg2: memref<16x128xf32, #tpu.memory_space<vmem>>, %arg3: memref<128x96xf32, #tpu.memory_space<vmem>>, %arg4: memref<16x128x128xf32, #tpu.memory_space<vmem>>, %arg5: memref<1x128xf32, #tpu.memory_space<vmem>>, %arg6: memref<1x8x128xf32, #tpu.memory_space<vmem>>) attributes {dimension_semantics = [#tpu.dimension_semantics<parallel>], iteration_bounds = array<i64: 2>, scalar_prefetch = 0 : i64, scratch_operands = 0 : i64, tpu.core_type = #tpu.core_type<tc>, window_params = [{transform_indices = @transform_0, window_bounds = array<i64: 1, 96, 16>}, {pipeline_mode = #tpu.pipeline_mode<synchronous>, transform_indices = @transform_1, window_bounds = array<i64: 16, 128>}, {pipeline_mode = #tpu.pipeline_mode<synchronous>, transform_indices = @transform_2, window_bounds = array<i64: 128, 96>}, {pipeline_mode = #tpu.pipeline_mode<synchronous>, transform_indices = @transform_3, window_bounds = array<i64: 16, 128, 128>}, {pipeline_mode = #tpu.pipeline_mode<synchronous>, transform_indices = @transform_4, window_bounds = array<i64: 1, 128>}, {transform_indices = @transform_5, window_bounds = array<i64: 1, 8, 128>}]} {
    %c0 = arith.constant 0 : index
    %c0_0 = arith.constant 0 : index
    %c0_1 = arith.constant 0 : index
    %0 = vector.load %arg1[%c0, %c0_0, %c0_1] : memref<1x96x16xf32, #tpu.memory_space<vmem>>, vector<1x96x16xf32>
    %1 = vector.shape_cast %0 : vector<1x96x16xf32> to vector<96x16xf32>
    %c0_2 = arith.constant 0 : index
    %c0_3 = arith.constant 0 : index
    %2 = vector.load %arg2[%c0_2, %c0_3] : memref<16x128xf32, #tpu.memory_space<vmem>>, vector<16x128xf32>
    %cst = arith.constant dense<0.000000e+00> : vector<96x128xf32>
    %3 = tpu.matmul %1, %2, %cst {dimension_numbers = #tpu.dot_dimension_numbers<[1], [0], [0], [1], [0, 0, 1, 1], [], []>} : vector<96x16xf32>, vector<16x128xf32>, vector<96x128xf32> -> vector<96x128xf32>
    %c0_4 = arith.constant 0 : index
    %c0_5 = arith.constant 0 : index
    %4 = vector.load %arg3[%c0_4, %c0_5] : memref<128x96xf32, #tpu.memory_space<vmem>>, vector<128x96xf32>
    %cst_6 = arith.constant dense<0.000000e+00> : vector<128x128xf32>
    %5 = tpu.matmul %4, %3, %cst_6 {dimension_numbers = #tpu.dot_dimension_numbers<[1], [0], [0], [1], [0, 0, 1, 1], [], []>} : vector<128x96xf32>, vector<96x128xf32>, vector<128x128xf32> -> vector<128x128xf32>
    %cst_7 = arith.constant 0.000000e+00 : f32
    %6 = vector.broadcast %cst_7 : f32 to vector<8x128xf32>
    %7 = vector.extract_strided_slice %5 {offsets = [0, 0], sizes = [8, 128], strides = [1, 1]} : vector<128x128xf32> to vector<8x128xf32>
    %c0_8 = arith.constant 0 : index
    %c0_9 = arith.constant 0 : index
    %c0_10 = arith.constant 0 : index
    %8 = vector.load %arg4[%c0_8, %c0_9, %c0_10] : memref<16x128x128xf32, #tpu.memory_space<vmem>>, vector<1x128x128xf32>
    %9 = vector.shape_cast %8 : vector<1x128x128xf32> to vector<128x128xf32>
    %cst_11 = arith.constant dense<0.000000e+00> : vector<8x128xf32>
    %10 = tpu.matmul %7, %9, %cst_11 {dimension_numbers = #tpu.dot_dimension_numbers<[1], [0], [0], [1], [0, 0, 1, 1], [], []>} : vector<8x128xf32>, vector<128x128xf32>, vector<8x128xf32> -> vector<8x128xf32>
    %11 = arith.addf %6, %10 : vector<8x128xf32>
    %12 = vector.extract_strided_slice %5 {offsets = [8, 0], sizes = [8, 128], strides = [1, 1]} : vector<128x128xf32> to vector<8x128xf32>
    %c1 = arith.constant 1 : index
    %c0_12 = arith.constant 0 : index
    %c0_13 = arith.constant 0 : index
    %13 = vector.load %arg4[%c1, %c0_12, %c0_13] : memref<16x128x128xf32, #tpu.memory_space<vmem>>, vector<1x128x128xf32>
    %14 = vector.shape_cast %13 : vector<1x128x128xf32> to vector<128x128xf32>
    %cst_14 = arith.constant dense<0.000000e+00> : vector<8x128xf32>
    %15 = tpu.matmul %12, %14, %cst_14 {dimension_numbers = #tpu.dot_dimension_numbers<[1], [0], [0], [1], [0, 0, 1, 1], [], []>} : vector<8x128xf32>, vector<128x128xf32>, vector<8x128xf32> -> vector<8x128xf32>
    %16 = arith.addf %11, %15 : vector<8x128xf32>
    %17 = vector.extract_strided_slice %5 {offsets = [16, 0], sizes = [8, 128], strides = [1, 1]} : vector<128x128xf32> to vector<8x128xf32>
    %c2 = arith.constant 2 : index
    %c0_15 = arith.constant 0 : index
    %c0_16 = arith.constant 0 : index
    %18 = vector.load %arg4[%c2, %c0_15, %c0_16] : memref<16x128x128xf32, #tpu.memory_space<vmem>>, vector<1x128x128xf32>
    %19 = vector.shape_cast %18 : vector<1x128x128xf32> to vector<128x128xf32>
    %cst_17 = arith.constant dense<0.000000e+00> : vector<8x128xf32>
    %20 = tpu.matmul %17, %19, %cst_17 {dimension_numbers = #tpu.dot_dimension_numbers<[1], [0], [0], [1], [0, 0, 1, 1], [], []>} : vector<8x128xf32>, vector<128x128xf32>, vector<8x128xf32> -> vector<8x128xf32>
    %21 = arith.addf %16, %20 : vector<8x128xf32>
    %22 = vector.extract_strided_slice %5 {offsets = [24, 0], sizes = [8, 128], strides = [1, 1]} : vector<128x128xf32> to vector<8x128xf32>
    %c3 = arith.constant 3 : index
    %c0_18 = arith.constant 0 : index
    %c0_19 = arith.constant 0 : index
    %23 = vector.load %arg4[%c3, %c0_18, %c0_19] : memref<16x128x128xf32, #tpu.memory_space<vmem>>, vector<1x128x128xf32>
    %24 = vector.shape_cast %23 : vector<1x128x128xf32> to vector<128x128xf32>
    %cst_20 = arith.constant dense<0.000000e+00> : vector<8x128xf32>
    %25 = tpu.matmul %22, %24, %cst_20 {dimension_numbers = #tpu.dot_dimension_numbers<[1], [0], [0], [1], [0, 0, 1, 1], [], []>} : vector<8x128xf32>, vector<128x128xf32>, vector<8x128xf32> -> vector<8x128xf32>
    %26 = arith.addf %21, %25 : vector<8x128xf32>
    %27 = vector.extract_strided_slice %5 {offsets = [32, 0], sizes = [8, 128], strides = [1, 1]} : vector<128x128xf32> to vector<8x128xf32>
    %c4 = arith.constant 4 : index
    %c0_21 = arith.constant 0 : index
    %c0_22 = arith.constant 0 : index
    %28 = vector.load %arg4[%c4, %c0_21, %c0_22] : memref<16x128x128xf32, #tpu.memory_space<vmem>>, vector<1x128x128xf32>
    %29 = vector.shape_cast %28 : vector<1x128x128xf32> to vector<128x128xf32>
    %cst_23 = arith.constant dense<0.000000e+00> : vector<8x128xf32>
    %30 = tpu.matmul %27, %29, %cst_23 {dimension_numbers = #tpu.dot_dimension_numbers<[1], [0], [0], [1], [0, 0, 1, 1], [], []>} : vector<8x128xf32>, vector<128x128xf32>, vector<8x128xf32> -> vector<8x128xf32>
    %31 = arith.addf %26, %30 : vector<8x128xf32>
    %32 = vector.extract_strided_slice %5 {offsets = [40, 0], sizes = [8, 128], strides = [1, 1]} : vector<128x128xf32> to vector<8x128xf32>
    %c5 = arith.constant 5 : index
    %c0_24 = arith.constant 0 : index
    %c0_25 = arith.constant 0 : index
    %33 = vector.load %arg4[%c5, %c0_24, %c0_25] : memref<16x128x128xf32, #tpu.memory_space<vmem>>, vector<1x128x128xf32>
    %34 = vector.shape_cast %33 : vector<1x128x128xf32> to vector<128x128xf32>
    %cst_26 = arith.constant dense<0.000000e+00> : vector<8x128xf32>
    %35 = tpu.matmul %32, %34, %cst_26 {dimension_numbers = #tpu.dot_dimension_numbers<[1], [0], [0], [1], [0, 0, 1, 1], [], []>} : vector<8x128xf32>, vector<128x128xf32>, vector<8x128xf32> -> vector<8x128xf32>
    %36 = arith.addf %31, %35 : vector<8x128xf32>
    %37 = vector.extract_strided_slice %5 {offsets = [48, 0], sizes = [8, 128], strides = [1, 1]} : vector<128x128xf32> to vector<8x128xf32>
    %c6 = arith.constant 6 : index
    %c0_27 = arith.constant 0 : index
    %c0_28 = arith.constant 0 : index
    %38 = vector.load %arg4[%c6, %c0_27, %c0_28] : memref<16x128x128xf32, #tpu.memory_space<vmem>>, vector<1x128x128xf32>
    %39 = vector.shape_cast %38 : vector<1x128x128xf32> to vector<128x128xf32>
    %cst_29 = arith.constant dense<0.000000e+00> : vector<8x128xf32>
    %40 = tpu.matmul %37, %39, %cst_29 {dimension_numbers = #tpu.dot_dimension_numbers<[1], [0], [0], [1], [0, 0, 1, 1], [], []>} : vector<8x128xf32>, vector<128x128xf32>, vector<8x128xf32> -> vector<8x128xf32>
    %41 = arith.addf %36, %40 : vector<8x128xf32>
    %42 = vector.extract_strided_slice %5 {offsets = [56, 0], sizes = [8, 128], strides = [1, 1]} : vector<128x128xf32> to vector<8x128xf32>
    %c7 = arith.constant 7 : index
    %c0_30 = arith.constant 0 : index
    %c0_31 = arith.constant 0 : index
    %43 = vector.load %arg4[%c7, %c0_30, %c0_31] : memref<16x128x128xf32, #tpu.memory_space<vmem>>, vector<1x128x128xf32>
    %44 = vector.shape_cast %43 : vector<1x128x128xf32> to vector<128x128xf32>
    %cst_32 = arith.constant dense<0.000000e+00> : vector<8x128xf32>
    %45 = tpu.matmul %42, %44, %cst_32 {dimension_numbers = #tpu.dot_dimension_numbers<[1], [0], [0], [1], [0, 0, 1, 1], [], []>} : vector<8x128xf32>, vector<128x128xf32>, vector<8x128xf32> -> vector<8x128xf32>
    %46 = arith.addf %41, %45 : vector<8x128xf32>
    %47 = vector.extract_strided_slice %5 {offsets = [64, 0], sizes = [8, 128], strides = [1, 1]} : vector<128x128xf32> to vector<8x128xf32>
    %c8 = arith.constant 8 : index
    %c0_33 = arith.constant 0 : index
    %c0_34 = arith.constant 0 : index
    %48 = vector.load %arg4[%c8, %c0_33, %c0_34] : memref<16x128x128xf32, #tpu.memory_space<vmem>>, vector<1x128x128xf32>
    %49 = vector.shape_cast %48 : vector<1x128x128xf32> to vector<128x128xf32>
    %cst_35 = arith.constant dense<0.000000e+00> : vector<8x128xf32>
    %50 = tpu.matmul %47, %49, %cst_35 {dimension_numbers = #tpu.dot_dimension_numbers<[1], [0], [0], [1], [0, 0, 1, 1], [], []>} : vector<8x128xf32>, vector<128x128xf32>, vector<8x128xf32> -> vector<8x128xf32>
    %51 = arith.addf %46, %50 : vector<8x128xf32>
    %52 = vector.extract_strided_slice %5 {offsets = [72, 0], sizes = [8, 128], strides = [1, 1]} : vector<128x128xf32> to vector<8x128xf32>
    %c9 = arith.constant 9 : index
    %c0_36 = arith.constant 0 : index
    %c0_37 = arith.constant 0 : index
    %53 = vector.load %arg4[%c9, %c0_36, %c0_37] : memref<16x128x128xf32, #tpu.memory_space<vmem>>, vector<1x128x128xf32>
    %54 = vector.shape_cast %53 : vector<1x128x128xf32> to vector<128x128xf32>
    %cst_38 = arith.constant dense<0.000000e+00> : vector<8x128xf32>
    %55 = tpu.matmul %52, %54, %cst_38 {dimension_numbers = #tpu.dot_dimension_numbers<[1], [0], [0], [1], [0, 0, 1, 1], [], []>} : vector<8x128xf32>, vector<128x128xf32>, vector<8x128xf32> -> vector<8x128xf32>
    %56 = arith.addf %51, %55 : vector<8x128xf32>
    %57 = vector.extract_strided_slice %5 {offsets = [80, 0], sizes = [8, 128], strides = [1, 1]} : vector<128x128xf32> to vector<8x128xf32>
    %c10 = arith.constant 10 : index
    %c0_39 = arith.constant 0 : index
    %c0_40 = arith.constant 0 : index
    %58 = vector.load %arg4[%c10, %c0_39, %c0_40] : memref<16x128x128xf32, #tpu.memory_space<vmem>>, vector<1x128x128xf32>
    %59 = vector.shape_cast %58 : vector<1x128x128xf32> to vector<128x128xf32>
    %cst_41 = arith.constant dense<0.000000e+00> : vector<8x128xf32>
    %60 = tpu.matmul %57, %59, %cst_41 {dimension_numbers = #tpu.dot_dimension_numbers<[1], [0], [0], [1], [0, 0, 1, 1], [], []>} : vector<8x128xf32>, vector<128x128xf32>, vector<8x128xf32> -> vector<8x128xf32>
    %61 = arith.addf %56, %60 : vector<8x128xf32>
    %62 = vector.extract_strided_slice %5 {offsets = [88, 0], sizes = [8, 128], strides = [1, 1]} : vector<128x128xf32> to vector<8x128xf32>
    %c11 = arith.constant 11 : index
    %c0_42 = arith.constant 0 : index
    %c0_43 = arith.constant 0 : index
    %63 = vector.load %arg4[%c11, %c0_42, %c0_43] : memref<16x128x128xf32, #tpu.memory_space<vmem>>, vector<1x128x128xf32>
    %64 = vector.shape_cast %63 : vector<1x128x128xf32> to vector<128x128xf32>
    %cst_44 = arith.constant dense<0.000000e+00> : vector<8x128xf32>
    %65 = tpu.matmul %62, %64, %cst_44 {dimension_numbers = #tpu.dot_dimension_numbers<[1], [0], [0], [1], [0, 0, 1, 1], [], []>} : vector<8x128xf32>, vector<128x128xf32>, vector<8x128xf32> -> vector<8x128xf32>
    %66 = arith.addf %61, %65 : vector<8x128xf32>
    %67 = vector.extract_strided_slice %5 {offsets = [96, 0], sizes = [8, 128], strides = [1, 1]} : vector<128x128xf32> to vector<8x128xf32>
    %c12 = arith.constant 12 : index
    %c0_45 = arith.constant 0 : index
    %c0_46 = arith.constant 0 : index
    %68 = vector.load %arg4[%c12, %c0_45, %c0_46] : memref<16x128x128xf32, #tpu.memory_space<vmem>>, vector<1x128x128xf32>
    %69 = vector.shape_cast %68 : vector<1x128x128xf32> to vector<128x128xf32>
    %cst_47 = arith.constant dense<0.000000e+00> : vector<8x128xf32>
    %70 = tpu.matmul %67, %69, %cst_47 {dimension_numbers = #tpu.dot_dimension_numbers<[1], [0], [0], [1], [0, 0, 1, 1], [], []>} : vector<8x128xf32>, vector<128x128xf32>, vector<8x128xf32> -> vector<8x128xf32>
    %71 = arith.addf %66, %70 : vector<8x128xf32>
    %72 = vector.extract_strided_slice %5 {offsets = [104, 0], sizes = [8, 128], strides = [1, 1]} : vector<128x128xf32> to vector<8x128xf32>
    %c13 = arith.constant 13 : index
    %c0_48 = arith.constant 0 : index
    %c0_49 = arith.constant 0 : index
    %73 = vector.load %arg4[%c13, %c0_48, %c0_49] : memref<16x128x128xf32, #tpu.memory_space<vmem>>, vector<1x128x128xf32>
    %74 = vector.shape_cast %73 : vector<1x128x128xf32> to vector<128x128xf32>
    %cst_50 = arith.constant dense<0.000000e+00> : vector<8x128xf32>
    %75 = tpu.matmul %72, %74, %cst_50 {dimension_numbers = #tpu.dot_dimension_numbers<[1], [0], [0], [1], [0, 0, 1, 1], [], []>} : vector<8x128xf32>, vector<128x128xf32>, vector<8x128xf32> -> vector<8x128xf32>
    %76 = arith.addf %71, %75 : vector<8x128xf32>
    %77 = vector.extract_strided_slice %5 {offsets = [112, 0], sizes = [8, 128], strides = [1, 1]} : vector<128x128xf32> to vector<8x128xf32>
    %c14 = arith.constant 14 : index
    %c0_51 = arith.constant 0 : index
    %c0_52 = arith.constant 0 : index
    %78 = vector.load %arg4[%c14, %c0_51, %c0_52] : memref<16x128x128xf32, #tpu.memory_space<vmem>>, vector<1x128x128xf32>
    %79 = vector.shape_cast %78 : vector<1x128x128xf32> to vector<128x128xf32>
    %cst_53 = arith.constant dense<0.000000e+00> : vector<8x128xf32>
    %80 = tpu.matmul %77, %79, %cst_53 {dimension_numbers = #tpu.dot_dimension_numbers<[1], [0], [0], [1], [0, 0, 1, 1], [], []>} : vector<8x128xf32>, vector<128x128xf32>, vector<8x128xf32> -> vector<8x128xf32>
    %81 = arith.addf %76, %80 : vector<8x128xf32>
    %82 = vector.extract_strided_slice %5 {offsets = [120, 0], sizes = [8, 128], strides = [1, 1]} : vector<128x128xf32> to vector<8x128xf32>
    %c15 = arith.constant 15 : index
    %c0_54 = arith.constant 0 : index
    %c0_55 = arith.constant 0 : index
    %83 = vector.load %arg4[%c15, %c0_54, %c0_55] : memref<16x128x128xf32, #tpu.memory_space<vmem>>, vector<1x128x128xf32>
    %84 = vector.shape_cast %83 : vector<1x128x128xf32> to vector<128x128xf32>
    %cst_56 = arith.constant dense<0.000000e+00> : vector<8x128xf32>
    %85 = tpu.matmul %82, %84, %cst_56 {dimension_numbers = #tpu.dot_dimension_numbers<[1], [0], [0], [1], [0, 0, 1, 1], [], []>} : vector<8x128xf32>, vector<128x128xf32>, vector<8x128xf32> -> vector<8x128xf32>
    %86 = arith.addf %81, %85 : vector<8x128xf32>
    %c0_57 = arith.constant 0 : index
    %c0_58 = arith.constant 0 : index
    %87 = vector.load %arg5[%c0_57, %c0_58] : memref<1x128xf32, #tpu.memory_space<vmem>>, vector<1x128xf32>
    %88 = vector.broadcast %87 : vector<1x128xf32> to vector<8x128xf32>
    %89 = arith.addf %86, %88 : vector<8x128xf32>
    %c0_59 = arith.constant 0 : index
    %c0_60 = arith.constant 0 : index
    %c0_61 = arith.constant 0 : index
    %90 = vector.load %arg6[%c0_59, %c0_60, %c0_61] : memref<1x8x128xf32, #tpu.memory_space<vmem>>, vector<1x8x128xf32>
    %91 = vector.shape_cast %90 : vector<1x8x128xf32> to vector<8x128xf32>
    %92 = vector.shape_cast %89 : vector<8x128xf32> to vector<1x8x128xf32>
    tpu.vector_store %arg6[%c0_59, %c0_60, %c0_61], %92 {strides = array<i32>} : memref<1x8x128xf32, #tpu.memory_space<vmem>>, vector<1x8x128xf32>,
    return
  }
  func.func @transform_0(%arg0: i32) -> (i32, i32, i32) {
    %c0_i32 = arith.constant 0 : i32
    %c0_i32_0 = arith.constant 0 : i32
    %c0_i32_1 = arith.constant 0 : i32
    return %arg0, %c0_i32, %c0_i32_0 : i32, i32, i32
  }
  func.func @transform_1(%arg0: i32) -> (i32, i32) {
    %c0_i32 = arith.constant 0 : i32
    %c0_i32_0 = arith.constant 0 : i32
    %c0_i32_1 = arith.constant 0 : i32
    return %c0_i32, %c0_i32_0 : i32, i32
  }
  func.func @transform_2(%arg0: i32) -> (i32, i32) {
    %c0_i32 = arith.constant 0 : i32
    %c0_i32_0 = arith.constant 0 : i32
    %c0_i32_1 = arith.constant 0 : i32
    return %c0_i32, %c0_i32_0 : i32, i32
  }
  func.func @transform_3(%arg0: i32) -> (i32, i32, i32) {
    %c0_i32 = arith.constant 0 : i32
    %c0_i32_0 = arith.constant 0 : i32
    %c0_i32_1 = arith.constant 0 : i32
    %c0_i32_2 = arith.constant 0 : i32
    return %c0_i32, %c0_i32_0, %c0_i32_1 : i32, i32, i32
  }
  func.func @transform_4(%arg0: i32) -> (i32, i32) {
    %c0_i32 = arith.constant 0 : i32
    %c0_i32_0 = arith.constant 0 : i32
    %c0_i32_1 = arith.constant 0 : i32
    return %c0_i32, %c0_i32_0 : i32, i32
  }
  func.func @transform_5(%arg0: i32) -> (i32, i32, i32) {
    %c0_i32 = arith.constant 0 : i32
    %c0_i32_0 = arith.constant 0 : i32
    %c0_i32_1 = arith.constant 0 : i32
    return %arg0, %c0_i32, %c0_i32_0 : i32, i32, i32
  }
}

</mosaic_0001>

<llo_original>
// kernel: _forward.1
$region0: #{_forward.1}
  #allocation0 [shape = 'u32[]', space=smem, size = 0x4, offset = 0x4, fixed_abs, tag = 'smem constant byte address 0x4 - core index']
  #allocation1 [shape = 'u32[144,128]{1,0:T(1,128)}', space=vmem, size = 0x12000, scoped, tag = 'internal scratch']
  %s0 = inlined_call_operand.hbm [shape: f32[2,96,16], index: 0, kind: input, shape index: {}]
  %s1 = inlined_call_operand.hbm [shape: f32[16,128], index: 1, kind: input, shape index: {}]
  %s2 = inlined_call_operand.hbm [shape: f32[128,96], index: 2, kind: input, shape index: {}]
  %s3 = inlined_call_operand.hbm [shape: f32[16,128,128], index: 3, kind: input, shape index: {}]
  %s4 = inlined_call_operand.vmem [shape: f32[1,128], index: 4, kind: input, shape index: {}]
  %s5 = inlined_call_operand.vmem [shape: f32[2,8,128], index: 5, kind: output, shape index: {}]
  %s6 = sld [smem:[#allocation0]]
  $region69: #{_forward.1} parent=0
    _
  %s8 = ssub.s32 1, %s6
  %s9 = scalar_select 0, %s8, %s6
  $region1: #{_forward.1} parent=0
    #allocation2 [shape = 'u8[98304]{0}', space=vmem, size = 0x18000, scoped, tag = 'input window, operand 0']
    #allocation3 [shape = 's32[2]{0}', space=sflag, size = 0x8, scoped, tag = 'scoped memory for _forward.1']
    #allocation4 [shape = 'u8[8192]{0}', space=vmem, size = 0x2000, scoped, tag = 'input window, operand 1, single buffered']
    #allocation5 [shape = 's32[1]{0}', space=sflag, size = 0x4, scoped, tag = 'scoped memory for _forward.1']
    #allocation6 [shape = 'u8[65536]{0}', space=vmem, size = 0x10000, scoped, tag = 'input window, operand 2, single buffered']
    #allocation7 [shape = 'u8[1048576]{0}', space=vmem, size = 0x100000, scoped, tag = 'input window, operand 3, single buffered']
    #allocation8 [shape = 's32[1]{0}', space=sflag, size = 0x4, scoped, tag = 'scoped memory for _forward.1']
    %10 = vsyncpa [#allocation3], 0
    %s11 = scalar_lea.sflag [#allocation3], 1
    %12 = vsyncpa %s11, 0
    %13 = vsyncpa [#allocation5], 0
    %14 = vsyncpa [#allocation8], 0
    loop: start=0, step=1, limit=4
    $region2: #{_forward.1} parent=1 // loop_pre_header
      _
    $region3: #{_forward.1} parent=1 // loop_header
      %s16 = sphi 0, %s20
      %p17 = scmp.ge.s32.totalorder %s16, 4
      %s26 = sphi 0, %s28
      %s29 = sphi 0, %s26
      %s30 = sphi 0, %s29
      %s46 = sphi 0, %s30
      %s50 = sphi 0, %s50
      %s52 = sphi 0, %s50
      %s53 = sphi 0, %s52
      %s67 = sphi 0, %s53
      %s71 = sphi 0, %s71
      %s73 = sphi 0, %s71
      %s74 = sphi 0, %s73
      %s88 = sphi 0, %s74
      %s92 = sphi 0, %s92
      %s94 = sphi 0, %s92
      %s95 = sphi 0, %s94
      %s109 = sphi 0, %s95
      %s113 = sphi 0, %s113
      %s115 = sphi 0, %s113
      %s116 = sphi 0, %s115
      %s130 = sphi 0, %s116
      %s136 = sphi 0, %s138
      %s139 = sphi 0, %s136
      %s140 = sphi 0, %s139
      %s156 = sphi 0, %s140
    $region4: #{_forward.1} parent=1 // loop_header_branch
      %19 = sbr.rel (%p17) target = $region8
    $region5: #{_forward.1} parent=1 // loop_body
      %s21 = ssub.s32 %s16, 1
      %s22 = ssub.s32 %s16, 2
      %s23 = sadd.s32 %s16, 1
      %s24 = ssub.s32 %s16, %s23
      %p25 = scmp.eq.s32.totalorder %s24, 0
      %s27 = sadd.s32 %s26, 1
      %s28 = scalar_select %p25, %s26, %s27
      %p31 = pneg %p25
      %p32 = scmp.eq.s32.totalorder %s16, 1
      %p33 = por %p31, %p32
      %p34 = scmp.ne.s32.totalorder %s26, %s29
      %p35 = scmp.eq.s32.totalorder %s16, 0
      %p36 = por %p34, %p35
      %p37 = scmp.ne.s32.totalorder %s26, %s29
      %p38 = scmp.eq.s32.totalorder %s21, 1
      %p39 = por %p37, %p38
      %p40 = scmp.ne.s32.totalorder %s29, %s30
      %p41 = scmp.eq.s32.totalorder %s21, 0
      %p42 = por %p40, %p41
      %p43 = scmp.ne.s32.totalorder %s29, %s30
      %p44 = scmp.eq.s32.totalorder %s22, 1
      %p45 = por %p43, %p44
      %p47 = scmp.ne.s32.totalorder %s30, %s46
      %p48 = scmp.eq.s32.totalorder %s22, 0
      %p49 = por %p47, %p48
      %s51 = sadd.s32 %s50, 1
      %p54 = scmp.eq.s32.totalorder %s16, 1
      %p55 = scmp.ne.s32.totalorder %s50, %s52
      %p56 = scmp.eq.s32.totalorder %s16, 0
      %p57 = por %p55, %p56
      %p58 = scmp.ne.s32.totalorder %s50, %s52
      %p59 = scmp.eq.s32.totalorder %s21, 1
      %p60 = por %p58, %p59
      %p61 = scmp.ne.s32.totalorder %s52, %s53
      %p62 = scmp.eq.s32.totalorder %s21, 0
      %p63 = por %p61, %p62
      %p64 = scmp.ne.s32.totalorder %s52, %s53
      %p65 = scmp.eq.s32.totalorder %s22, 1
      %p66 = por %p64, %p65
      %p68 = scmp.ne.s32.totalorder %s53, %s67
      %p69 = scmp.eq.s32.totalorder %s22, 0
      %p70 = por %p68, %p69
      %s72 = sadd.s32 %s71, 1
      %p75 = scmp.eq.s32.totalorder %s16, 1
      %p76 = scmp.ne.s32.totalorder %s71, %s73
      %p77 = scmp.eq.s32.totalorder %s16, 0
      %p78 = por %p76, %p77
      %p79 = scmp.ne.s32.totalorder %s71, %s73
      %p80 = scmp.eq.s32.totalorder %s21, 1
      %p81 = por %p79, %p80
      %p82 = scmp.ne.s32.totalorder %s73, %s74
      %p83 = scmp.eq.s32.totalorder %s21, 0
      %p84 = por %p82, %p83
      %p85 = scmp.ne.s32.totalorder %s73, %s74
      %p86 = scmp.eq.s32.totalorder %s22, 1
      %p87 = por %p85, %p86
      %p89 = scmp.ne.s32.totalorder %s74, %s88
      %p90 = scmp.eq.s32.totalorder %s22, 0
      %p91 = por %p89, %p90
      %s93 = sadd.s32 %s92, 1
      %p96 = scmp.eq.s32.totalorder %s16, 1
      %p97 = scmp.ne.s32.totalorder %s92, %s94
      %p98 = scmp.eq.s32.totalorder %s16, 0
      %p99 = por %p97, %p98
      %p100 = scmp.ne.s32.totalorder %s92, %s94
      %p101 = scmp.eq.s32.totalorder %s21, 1
      %p102 = por %p100, %p101
      %p103 = scmp.ne.s32.totalorder %s94, %s95
      %p104 = scmp.eq.s32.totalorder %s21, 0
      %p105 = por %p103, %p104
      %p106 = scmp.ne.s32.totalorder %s94, %s95
      %p107 = scmp.eq.s32.totalorder %s22, 1
      %p108 = por %p106, %p107
      %p110 = scmp.ne.s32.totalorder %s95, %s109
      %p111 = scmp.eq.s32.totalorder %s22, 0
      %p112 = por %p110, %p111
      %s114 = sadd.s32 %s113, 1
      %p117 = scmp.eq.s32.totalorder %s16, 1
      %p118 = scmp.ne.s32.totalorder %s113, %s115
      %p119 = scmp.eq.s32.totalorder %s16, 0
      %p120 = por %p118, %p119
      %p121 = scmp.ne.s32.totalorder %s113, %s115
      %p122 = scmp.eq.s32.totalorder %s21, 1
      %p123 = por %p121, %p122
      %p124 = scmp.ne.s32.totalorder %s115, %s116
      %p125 = scmp.eq.s32.totalorder %s21, 0
      %p126 = por %p124, %p125
      %p127 = scmp.ne.s32.totalorder %s115, %s116
      %p128 = scmp.eq.s32.totalorder %s22, 1
      %p129 = por %p127, %p128
      %p131 = scmp.ne.s32.totalorder %s116, %s130
      %p132 = scmp.eq.s32.totalorder %s22, 0
      %p133 = por %p131, %p132
      %s134 = ssub.s32 %s16, %s23
      %p135 = scmp.eq.s32.totalorder %s134, 0
      %s137 = sadd.s32 %s136, 1
      %s138 = scalar_select %p135, %s136, %s137
      %p141 = pneg %p135
      %p142 = scmp.eq.s32.totalorder %s16, 1
      %p143 = por %p141, %p142
      %p144 = scmp.ne.s32.totalorder %s136, %s139
      %p145 = scmp.eq.s32.totalorder %s16, 0
      %p146 = por %p144, %p145
      %p147 = scmp.ne.s32.totalorder %s136, %s139
      %p148 = scmp.eq.s32.totalorder %s21, 1
      %p149 = por %p147, %p148
      %p150 = scmp.ne.s32.totalorder %s139, %s140
      %p151 = scmp.eq.s32.totalorder %s21, 0
      %p152 = por %p150, %p151
      %p153 = scmp.ne.s32.totalorder %s139, %s140
      %p154 = scmp.eq.s32.totalorder %s22, 1
      %p155 = por %p153, %p154
      %p157 = scmp.ne.s32.totalorder %s140, %s156
      %p158 = scmp.eq.s32.totalorder %s22, 0
      %p159 = por %p157, %p158
      %p160 = scmp.le.s32.totalorder 1, %s16
      %p161 = scmp.lt.s32.totalorder %s16, 3
      %p162 = pnand %p160, %p161
      %p163 = pneg %p162
      // Predicated region
      $region9: #{_forward.1} parent=5 // pred_check
        _
      $region10: #{_forward.1} parent=5 // pred_check_branch
        %165 = sbr.rel (%p162) target = $region12
      $region11: #{_forward.1} parent=5 // pred_region
        %s166 = ssub.s32 %s16, 1
        // Predicated region
        $region13: #{_forward.1} parent=11 // pred_check
          %p167 = pneg %p63
        $region14: #{_forward.1} parent=11 // pred_check_branch
          %169 = sbr.rel (%p167) target = $region16
        $region15: #{_forward.1} parent=11 // pred_region
          %s171 = ssub.s32 256, 256
          %172 = vsyncadd [#allocation5], %s171
          %s173 = sshll.u32 [#allocation4], 4
          %s174 = int_to_ptr.vmem [resolvable:$true] %s173
          %179 = dma.hbm_to_vmem [thread:$0]  %s1, 256, %s174, [#allocation5], 128, 128, 8
        $region16: #{_forward.1} parent=11 // pred_fallthru
          _
        // Predicated region
        $region17: #{_forward.1} parent=11 // pred_check
          %p180 = pneg %p84
        $region18: #{_forward.1} parent=11 // pred_check_branch
          %182 = sbr.rel (%p180) target = $region20
        $region19: #{_forward.1} parent=11 // pred_region
          %s184 = ssub.s32 2048, 2048
          %185 = vsyncadd [#allocation5], %s184
          %s186 = sshll.u32 [#allocation6], 4
          %s187 = int_to_ptr.vmem [resolvable:$true] %s186
          %192 = dma.hbm_to_vmem [thread:$0]  %s2, 2048, %s187, [#allocation5], 128, 128, 8
        $region20: #{_forward.1} parent=11 // pred_fallthru
          _
        // Predicated region
        $region21: #{_forward.1} parent=11 // pred_check
          %p193 = pneg %p105
        $region22: #{_forward.1} parent=11 // pred_check_branch
          %195 = sbr.rel (%p193) target = $region24
        $region23: #{_forward.1} parent=11 // pred_region
          %s197 = ssub.s32 32768, 32768
          %198 = vsyncadd [#allocation8], %s197
          %s199 = sshll.u32 [#allocation7], 4
          %s200 = int_to_ptr.vmem [resolvable:$true] %s199
          %205 = dma.hbm_to_vmem [thread:$0]  %s3, 32768, %s200, [#allocation8], 128, 128, 8
        $region24: #{_forward.1} parent=11 // pred_fallthru
          _
        // Predicated region
        $region25: #{_forward.1} parent=11 // pred_check
          %p206 = pneg %p126
        $region26: #{_forward.1} parent=11 // pred_check_branch
          %208 = sbr.rel (%p206) target = $region28
        $region27: #{_forward.1} parent=11 // pred_region
          _
        $region28: #{_forward.1} parent=11 // pred_fallthru
          _
      $region12: #{_forward.1} parent=5 // pred_fallthru
        _
      %p209 = scmp.lt.s32.totalorder %s16, 2
      // Predicated region
      $region29: #{_forward.1} parent=5 // pred_check
        %p210 = pneg %p209
      $region30: #{_forward.1} parent=5 // pred_check_branch
        %212 = sbr.rel (%p210) target = $region32
      $region31: #{_forward.1} parent=5 // pred_region
        // Predicated region
        $region33: #{_forward.1} parent=31 // pred_check
          %p213 = pneg %p36
        $region34: #{_forward.1} parent=31 // pred_check_branch
          %215 = sbr.rel (%p213) target = $region36
        $region35: #{_forward.1} parent=31 // pred_region
          %s216 = sand.u32 %s26, 1
          %s217 = scalar_lea.sflag [#allocation3], %s216
          %s218 = sand.u32 %s26, 1
          %s219 = smul.addr %s218, 96
          %s220 = scalar_lea.vmem [#allocation2], %s219
          %s222 = ssub.s32 1536, 1536
          %223 = vsyncadd %s217, %s222
          %s224 = smul.addr %s16, 12
          %s225 = smul.addr %s224, 128
          %s226 = scalar_lea.hbm %s0, %s225
          %s227 = sshll.u32 %s220, 4
          %s228 = int_to_ptr.vmem [resolvable:$true] %s227
          %233 = dma.hbm_to_vmem [thread:$0]  %s226, 1536, %s228, %s217, 128, 128, 8
        $region36: #{_forward.1} parent=31 // pred_fallthru
          _
      $region32: #{_forward.1} parent=5 // pred_fallthru
        _
      %p234 = scmp.le.s32.totalorder 1, %s16
      %p235 = scmp.lt.s32.totalorder %s16, 3
      %p236 = pnand %p234, %p235
      %p237 = pneg %p236
      // Predicated region
      $region37: #{_forward.1} parent=5 // pred_check
        _
      $region38: #{_forward.1} parent=5 // pred_check_branch
        %239 = sbr.rel (%p236) target = $region40
      $region39: #{_forward.1} parent=5 // pred_region
        %s240 = ssub.s32 %s16, 1
        %s241 = sand.u32 %s29, 1
        %s242 = scalar_lea.sflag [#allocation3], %s241
        %s243 = sand.u32 %s29, 1
        %s244 = smul.addr %s243, 96
        %s245 = scalar_lea.vmem [#allocation2], %s244
        // Predicated region
        $region41: #{_forward.1} parent=39 // pred_check
          %p246 = pneg %p42
        $region42: #{_forward.1} parent=39 // pred_check_branch
          %248 = sbr.rel (%p246) target = $region44
        $region43: #{_forward.1} parent=39 // pred_region
          %249 = dma.done %s242, 1536
        $region44: #{_forward.1} parent=39 // pred_fallthru
          _
        // Predicated region
        $region45: #{_forward.1} parent=39 // pred_check
          %p250 = pneg %p63
        $region46: #{_forward.1} parent=39 // pred_check_branch
          %252 = sbr.rel (%p250) target = $region48
        $region47: #{_forward.1} parent=39 // pred_region
          %253 = dma.done [#allocation5], 256
        $region48: #{_forward.1} parent=39 // pred_fallthru
          _
        // Predicated region
        $region49: #{_forward.1} parent=39 // pred_check
          %p254 = pneg %p84
        $region50: #{_forward.1} parent=39 // pred_check_branch
          %256 = sbr.rel (%p254) target = $region52
        $region51: #{_forward.1} parent=39 // pred_region
          %257 = dma.done [#allocation5], 2048
        $region52: #{_forward.1} parent=39 // pred_fallthru
          _
        // Predicated region
        $region53: #{_forward.1} parent=39 // pred_check
          %p258 = pneg %p105
        $region54: #{_forward.1} parent=39 // pred_check_branch
          %260 = sbr.rel (%p258) target = $region56
        $region55: #{_forward.1} parent=39 // pred_region
          %261 = dma.done [#allocation8], 32768
        $region56: #{_forward.1} parent=39 // pred_fallthru
          _
        %s262 = sand.u32 %s29, 1
        %s263 = scalar_lea.sflag [#allocation3], %s262
        %s264 = sand.u32 %s29, 1
        %s265 = smul.addr %s264, 96
        %s266 = scalar_lea.vmem [#allocation2], %s265
        %p267 = pneg %p42
        %p268 = pneg %p39
        %p269 = pneg %p63
        %p270 = pneg %p60
        %p271 = pneg %p84
        %p272 = pneg %p81
        %p273 = pneg %p105
        %p274 = pneg %p102
        %p275 = pneg %p126
        %p276 = pneg %p123
        %p277 = pneg %p152
        %p278 = pneg %p149
        %p279 = scmp.lt.s32.totalorder %s21, 1
        %s280 = scalar_select %p279, %s21, 1
        %s281 = smul.addr %s280, 8
        %s282 = scalar_lea.vmem %s5, %s281
        %p283 = scmp.lt.s32.totalorder %s21, 1
        %s284 = scalar_select %p283, %s21, 1
        %s285 = smul.addr %s284, 8
        %s286 = scalar_lea.vmem %s5, %s285
        %v287 = vld [vmem:[%s245] sm:$0xff]
        %v288 = vld [vmem:[%s245 + $0x8] sm:$0xff]
        %v289 = vld [vmem:[%s245 + $0x10] sm:$0xff]
        %v290 = vld [vmem:[%s245 + $0x18] sm:$0xff]
        %v291 = vld [vmem:[%s245 + $0x20] sm:$0xff]
        %v292 = vld [vmem:[%s245 + $0x28] sm:$0xff]
        %v293 = vld [vmem:[%s245 + $0x30] sm:$0xff]
        %v294 = vld [vmem:[%s245 + $0x38] sm:$0xff]
        %v295 = vld [vmem:[%s245 + $0x40] sm:$0xff]
        %v296 = vld [vmem:[%s245 + $0x48] sm:$0xff]
        %v297 = vld [vmem:[%s245 + $0x50] sm:$0xff]
        %v298 = vld [vmem:[%s245 + $0x58] sm:$0xff]
        %v299 = vld [vmem:[#allocation4] sm:$0xff]
        %v300 = vld [vmem:[#allocation4 + $0x8] sm:$0xff]
        %vm301 = vcmask 130048
        %v303 = vsel %vm301, %v287, 0
        %v306 = vsel %vm301, %v288, 0
        %v309 = vsel %vm301, %v289, 0
        %v312 = vsel %vm301, %v290, 0
        %v315 = vsel %vm301, %v291, 0
        %v318 = vsel %vm301, %v292, 0
        %v321 = vsel %vm301, %v293, 0
        %v324 = vsel %vm301, %v294, 0
        %v327 = vsel %vm301, %v295, 0
        %v330 = vsel %vm301, %v296, 0
        %v333 = vsel %vm301, %v297, 0
        %v336 = vsel %vm301, %v298, 0
        %338 = vmatprep.subr.mxu0 0.0
        %339 = vmatpush1.msra.mxu0 0.0
        %340 = vmatprep.subr.mxu0 0.0
        %341 = vmatpush1.msra.mxu0 0.0
        %342 = vmatprep.subr.mxu0 0.0
        %343 = vmatpush1.msra.mxu0 0.0
        %344 = vmatprep.subr.mxu0 0.0
        %345 = vmatpush1.msra.mxu0 0.0
        %346 = vmatprep.subr.mxu0 0.0
        %347 = vmatpush1.msra.mxu0 0.0
        %348 = vmatprep.subr.mxu0 0.0
        %349 = vmatpush1.msra.mxu0 0.0
        %350 = vmatprep.subr.mxu0 0.0
        %351 = vmatpush1.msra.mxu0 0.0
        %352 = vmatprep.subr.mxu0 0.0
        %353 = vmatpush1.msra.mxu0 0.0
        %354 = vmatprep.subr.mxu0 0.0
        %355 = vmatpush1.msra.mxu0 0.0
        %356 = vmatprep.subr.mxu0 0.0
        %357 = vmatpush1.msra.mxu0 0.0
        %358 = vmatprep.subr.mxu0 0.0
        %359 = vmatpush1.msra.mxu0 0.0
        %360 = vmatprep.subr.mxu0 0.0
        %361 = vmatpush1.msra.mxu0 0.0
        %362 = vmatprep.subr.mxu0 0.0
        %363 = vmatpush1.msra.mxu0 0.0
        %364 = vmatprep.subr.mxu0 0.0
        %365 = vmatpush1.msra.mxu0 0.0
        %366 = vmatprep.subr.mxu0 0.0
        %367 = vmatpush1.msra.mxu0 %v300
        %368 = vmatprep.subr.mxu0 0.0
        %369 = vmatpush1.msra.mxu0 %v299
        %370 = vmatprep.subr.mxu0 0.0
        %371 = vmatpush2.msra.mxu0 0.0
        %372 = vmatprep.subr.mxu0 0.0
        %373 = vmatpush2.msra.mxu0 0.0
        %374 = vmatprep.subr.mxu0 0.0
        %375 = vmatpush2.msra.mxu0 0.0
        %376 = vmatprep.subr.mxu0 0.0
        %377 = vmatpush2.msra.mxu0 0.0
        %378 = vmatprep.subr.mxu0 0.0
        %379 = vmatpush2.msra.mxu0 0.0
        %380 = vmatprep.subr.mxu0 0.0
        %381 = vmatpush2.msra.mxu0 0.0
        %382 = vmatprep.subr.mxu0 0.0
        %383 = vmatpush2.msra.mxu0 0.0
        %384 = vmatprep.subr.mxu0 0.0
        %385 = vmatpush2.msra.mxu0 0.0
        %386 = vmatprep.subr.mxu0 0.0
        %387 = vmatpush2.msra.mxu0 0.0
        %388 = vmatprep.subr.mxu0 0.0
        %389 = vmatpush2.msra.mxu0 0.0
        %390 = vmatprep.subr.mxu0 0.0
        %391 = vmatpush2.msra.mxu0 0.0
        %392 = vmatprep.subr.mxu0 0.0
        %393 = vmatpush2.msra.mxu0 0.0
        %394 = vmatprep.subr.mxu0 0.0
        %395 = vmatpush2.msra.mxu0 0.0
        %396 = vmatprep.subr.mxu0 0.0
        %397 = vmatpush2.msra.mxu0 0.0
        %398 = vmatprep.subr.mxu0 0.0
        %399 = vmatpush2.msra.mxu0 0.0
        %400 = vmatprep.subr.mxu0 0.0
        %401 = vmatpush2.msra.mxu0 0.0
        %402 = vmatprep.mubr.f32.mxu0 0.0
        %403 = vmatmul.mubr.f32.gmra.mxu0 %v303
        %v404 = vpop.f32.mrf.mxu0
        %v405 = vadd.f32 0.0, %v404
        %v406 = vpop.f32.mrf.mxu0
        %407 = vmatprep.mubr.f32.mxu0 0.0
        %408 = vmatmul.mubr.f32.gmra.mxu0 %v306
        %v409 = vpop.f32.mrf.mxu0
        %v410 = vadd.f32 0.0, %v409
        %v411 = vpop.f32.mrf.mxu0
        %412 = vmatprep.mubr.f32.mxu0 0.0
        %413 = vmatmul.mubr.f32.gmra.mxu0 %v309
        %v414 = vpop.f32.mrf.mxu0
        %v415 = vadd.f32 0.0, %v414
        %v416 = vpop.f32.mrf.mxu0
        %417 = vmatprep.mubr.f32.mxu0 0.0
        %418 = vmatmul.mubr.f32.gmra.mxu0 %v312
        %v419 = vpop.f32.mrf.mxu0
        %v420 = vadd.f32 0.0, %v419
        %v421 = vpop.f32.mrf.mxu0
        %422 = vmatprep.mubr.f32.mxu0 0.0
        %423 = vmatmul.mubr.f32.gmra.mxu0 %v315
        %v424 = vpop.f32.mrf.mxu0
        %v425 = vadd.f32 0.0, %v424
        %v426 = vpop.f32.mrf.mxu0
        %427 = vmatprep.mubr.f32.mxu0 0.0
        %428 = vmatmul.mubr.f32.gmra.mxu0 %v318
        %v429 = vpop.f32.mrf.mxu0
        %v430 = vadd.f32 0.0, %v429
        %v431 = vpop.f32.mrf.mxu0
        %432 = vmatprep.mubr.f32.mxu0 0.0
        %433 = vmatmul.mubr.f32.gmra.mxu0 %v321
        %v434 = vpop.f32.mrf.mxu0
        %v435 = vadd.f32 0.0, %v434
        %v436 = vpop.f32.mrf.mxu0
        %437 = vmatprep.mubr.f32.mxu0 0.0
        %438 = vmatmul.mubr.f32.gmra.mxu0 %v324
        %v439 = vpop.f32.mrf.mxu0
        %v440 = vadd.f32 0.0, %v439
        %v441 = vpop.f32.mrf.mxu0
        %442 = vmatprep.mubr.f32.mxu0 0.0
        %443 = vmatmul.mubr.f32.gmra.mxu0 %v327
        %v444 = vpop.f32.mrf.mxu0
        %v445 = vadd.f32 0.0, %v444
        %v446 = vpop.f32.mrf.mxu0
        %447 = vmatprep.mubr.f32.mxu0 0.0
        %448 = vmatmul.mubr.f32.gmra.mxu0 %v330
        %v449 = vpop.f32.mrf.mxu0
        %v450 = vadd.f32 0.0, %v449
        %v451 = vpop.f32.mrf.mxu0
        %452 = vmatprep.mubr.f32.mxu0 0.0
        %453 = vmatmul.mubr.f32.gmra.mxu0 %v333
        %v454 = vpop.f32.mrf.mxu0
        %v455 = vadd.f32 0.0, %v454
        %v456 = vpop.f32.mrf.mxu0
        %457 = vmatprep.mubr.f32.mxu0 0.0
        %458 = vmatmul.mubr.f32.gmra.mxu0 %v336
        %v459 = vpop.f32.mrf.mxu0
        %v460 = vadd.f32 0.0, %v459
        %v461 = vpop.f32.mrf.mxu0
        %462 = vdwg.mxu0
        %v463 = vld [vmem:[#allocation6] sm:$0xff]
        %v464 = vld [vmem:[#allocation6 + $0x8] sm:$0xff]
        %v465 = vld [vmem:[#allocation6 + $0x10] sm:$0xff]
        %v466 = vld [vmem:[#allocation6 + $0x18] sm:$0xff]
        %v467 = vld [vmem:[#allocation6 + $0x20] sm:$0xff]
        %v468 = vld [vmem:[#allocation6 + $0x28] sm:$0xff]
        %v469 = vld [vmem:[#allocation6 + $0x30] sm:$0xff]
        %v470 = vld [vmem:[#allocation6 + $0x38] sm:$0xff]
        %v471 = vld [vmem:[#allocation6 + $0x40] sm:$0xff]
        %v472 = vld [vmem:[#allocation6 + $0x48] sm:$0xff]
        %v473 = vld [vmem:[#allocation6 + $0x50] sm:$0xff]
        %v474 = vld [vmem:[#allocation6 + $0x58] sm:$0xff]
        %v475 = vld [vmem:[#allocation6 + $0x60] sm:$0xff]
        %v476 = vld [vmem:[#allocation6 + $0x68] sm:$0xff]
        %v477 = vld [vmem:[#allocation6 + $0x70] sm:$0xff]
        %v478 = vld [vmem:[#allocation6 + $0x78] sm:$0xff]
        %vm479 = vcmask 785408
        %v481 = vsel %vm479, %v463, 0
        %v484 = vsel %vm479, %v464, 0
        %v487 = vsel %vm479, %v465, 0
        %v490 = vsel %vm479, %v466, 0
        %v493 = vsel %vm479, %v467, 0
        %v496 = vsel %vm479, %v468, 0
        %v499 = vsel %vm479, %v469, 0
        %v502 = vsel %vm479, %v470, 0
        %v505 = vsel %vm479, %v471, 0
        %v508 = vsel %vm479, %v472, 0
        %v511 = vsel %vm479, %v473, 0
        %v514 = vsel %vm479, %v474, 0
        %v517 = vsel %vm479, %v475, 0
        %v520 = vsel %vm479, %v476, 0
        %v523 = vsel %vm479, %v477, 0
        %v526 = vsel %vm479, %v478, 0
        %528 = vmatprep.subr.mxu0 0.0
        %529 = vmatpush1.msra.mxu0 0.0
        %530 = vmatprep.subr.mxu0 0.0
        %531 = vmatpush1.msra.mxu0 0.0
        %532 = vmatprep.subr.mxu0 0.0
        %533 = vmatpush1.msra.mxu0 0.0
        %534 = vmatprep.subr.mxu0 0.0
        %535 = vmatpush1.msra.mxu0 0.0
        %536 = vmatprep.subr.mxu0 0.0
        %537 = vmatpush1.msra.mxu0 %v460
        %538 = vmatprep.subr.mxu0 0.0
        %539 = vmatpush1.msra.mxu0 %v455
        %540 = vmatprep.subr.mxu0 0.0
        %541 = vmatpush1.msra.mxu0 %v450
        %542 = vmatprep.subr.mxu0 0.0
        %543 = vmatpush1.msra.mxu0 %v445
        %544 = vmatprep.subr.mxu0 0.0
        %545 = vmatpush1.msra.mxu0 %v440
        %546 = vmatprep.subr.mxu0 0.0
        %547 = vmatpush1.msra.mxu0 %v435
        %548 = vmatprep.subr.mxu0 0.0
        %549 = vmatpush1.msra.mxu0 %v430
        %550 = vmatprep.subr.mxu0 0.0
        %551 = vmatpush1.msra.mxu0 %v425
        %552 = vmatprep.subr.mxu0 0.0
        %553 = vmatpush1.msra.mxu0 %v420
        %554 = vmatprep.subr.mxu0 0.0
        %555 = vmatpush1.msra.mxu0 %v415
        %556 = vmatprep.subr.mxu0 0.0
        %557 = vmatpush1.msra.mxu0 %v410
        %558 = vmatprep.subr.mxu0 0.0
        %559 = vmatpush1.msra.mxu0 %v405
        %560 = vmatprep.subr.mxu0 0.0
        %561 = vmatpush2.msra.mxu0 0.0
        %562 = vmatprep.subr.mxu0 0.0
        %563 = vmatpush2.msra.mxu0 0.0
        %564 = vmatprep.subr.mxu0 0.0
        %565 = vmatpush2.msra.mxu0 0.0
        %566 = vmatprep.subr.mxu0 0.0
        %567 = vmatpush2.msra.mxu0 0.0
        %568 = vmatprep.subr.mxu0 0.0
        %569 = vmatpush2.msra.mxu0 0.0
        %570 = vmatprep.subr.mxu0 0.0
        %571 = vmatpush2.msra.mxu0 0.0
        %572 = vmatprep.subr.mxu0 0.0
        %573 = vmatpush2.msra.mxu0 0.0
        %574 = vmatprep.subr.mxu0 0.0
        %575 = vmatpush2.msra.mxu0 0.0
        %576 = vmatprep.subr.mxu0 0.0
        %577 = vmatpush2.msra.mxu0 0.0
        %578 = vmatprep.subr.mxu0 0.0
        %579 = vmatpush2.msra.mxu0 0.0
        %580 = vmatprep.subr.mxu0 0.0
        %581 = vmatpush2.msra.mxu0 0.0
        %582 = vmatprep.subr.mxu0 0.0
        %583 = vmatpush2.msra.mxu0 0.0
        %584 = vmatprep.subr.mxu0 0.0
        %585 = vmatpush2.msra.mxu0 0.0
        %586 = vmatprep.subr.mxu0 0.0
        %587 = vmatpush2.msra.mxu0 0.0
        %588 = vmatprep.subr.mxu0 0.0
        %589 = vmatpush2.msra.mxu0 0.0
        %590 = vmatprep.subr.mxu0 0.0
        %591 = vmatpush2.msra.mxu0 0.0
        %592 = vmatprep.mubr.f32.mxu0 0.0
        %593 = vmatmul.mubr.f32.gmra.mxu0 %v481
        %v594 = vpop.f32.mrf.mxu0
        %v595 = vadd.f32 0.0, %v594
        %v596 = vpop.f32.mrf.mxu0
        %597 = vmatprep.mubr.f32.mxu0 0.0
        %598 = vmatmul.mubr.f32.gmra.mxu0 %v484
        %v599 = vpop.f32.mrf.mxu0
        %v600 = vadd.f32 0.0, %v599
        %v601 = vpop.f32.mrf.mxu0
        %602 = vmatprep.mubr.f32.mxu0 0.0
        %603 = vmatmul.mubr.f32.gmra.mxu0 %v487
        %v604 = vpop.f32.mrf.mxu0
        %v605 = vadd.f32 0.0, %v604
        %v606 = vpop.f32.mrf.mxu0
        %607 = vmatprep.mubr.f32.mxu0 0.0
        %608 = vmatmul.mubr.f32.gmra.mxu0 %v490
        %v609 = vpop.f32.mrf.mxu0
        %v610 = vadd.f32 0.0, %v609
        %v611 = vpop.f32.mrf.mxu0
        %612 = vmatprep.mubr.f32.mxu0 0.0
        %613 = vmatmul.mubr.f32.gmra.mxu0 %v493
        %v614 = vpop.f32.mrf.mxu0
        %v615 = vadd.f32 0.0, %v614
        %v616 = vpop.f32.mrf.mxu0
        %617 = vmatprep.mubr.f32.mxu0 0.0
        %618 = vmatmul.mubr.f32.gmra.mxu0 %v496
        %v619 = vpop.f32.mrf.mxu0
        %v620 = vadd.f32 0.0, %v619
        %v621 = vpop.f32.mrf.mxu0
        %622 = vmatprep.mubr.f32.mxu0 0.0
        %623 = vmatmul.mubr.f32.gmra.mxu0 %v499
        %v624 = vpop.f32.mrf.mxu0
        %v625 = vadd.f32 0.0, %v624
        %v626 = vpop.f32.mrf.mxu0
        %627 = vmatprep.mubr.f32.mxu0 0.0
        %628 = vmatmul.mubr.f32.gmra.mxu0 %v502
        %v629 = vpop.f32.mrf.mxu0
        %v630 = vadd.f32 0.0, %v629
        %v631 = vpop.f32.mrf.mxu0
        %632 = vmatprep.mubr.f32.mxu0 0.0
        %633 = vmatmul.mubr.f32.gmra.mxu0 %v505
        %v634 = vpop.f32.mrf.mxu0
        %v635 = vadd.f32 0.0, %v634
        %v636 = vpop.f32.mrf.mxu0
        %637 = vmatprep.mubr.f32.mxu0 0.0
        %638 = vmatmul.mubr.f32.gmra.mxu0 %v508
        %v639 = vpop.f32.mrf.mxu0
        %v640 = vadd.f32 0.0, %v639
        %v641 = vpop.f32.mrf.mxu0
        %642 = vmatprep.mubr.f32.mxu0 0.0
        %643 = vmatmul.mubr.f32.gmra.mxu0 %v511
        %v644 = vpop.f32.mrf.mxu0
        %v645 = vadd.f32 0.0, %v644
        %v646 = vpop.f32.mrf.mxu0
        %647 = vmatprep.mubr.f32.mxu0 0.0
        %648 = vmatmul.mubr.f32.gmra.mxu0 %v514
        %v649 = vpop.f32.mrf.mxu0
        %v650 = vadd.f32 0.0, %v649
        %v651 = vpop.f32.mrf.mxu0
        %652 = vmatprep.mubr.f32.mxu0 0.0
        %653 = vmatmul.mubr.f32.gmra.mxu0 %v517
        %v654 = vpop.f32.mrf.mxu0
        %v655 = vadd.f32 0.0, %v654
        %v656 = vpop.f32.mrf.mxu0
        %657 = vmatprep.mubr.f32.mxu0 0.0
        %658 = vmatmul.mubr.f32.gmra.mxu0 %v520
        %v659 = vpop.f32.mrf.mxu0
        %v660 = vadd.f32 0.0, %v659
        %v661 = vpop.f32.mrf.mxu0
        %662 = vmatprep.mubr.f32.mxu0 0.0
        %663 = vmatmul.mubr.f32.gmra.mxu0 %v523
        %v664 = vpop.f32.mrf.mxu0
        %v665 = vadd.f32 0.0, %v664
        %v666 = vpop.f32.mrf.mxu0
        %667 = vmatprep.mubr.f32.mxu0 0.0
        %668 = vmatmul.mubr.f32.gmra.mxu0 %v526
        %v669 = vpop.f32.mrf.mxu0
        %v670 = vadd.f32 0.0, %v669
        %v671 = vpop.f32.mrf.mxu0
        %672 = vdwg.mxu0
        %v673 = vld [vmem:[#allocation7] sm:$0xff]
        %v674 = vld [vmem:[#allocation7 + $0x8] sm:$0xff]
        %v675 = vld [vmem:[#allocation7 + $0x10] sm:$0xff]
        %v676 = vld [vmem:[#allocation7 + $0x18] sm:$0xff]
        %v677 = vld [vmem:[#allocation7 + $0x20] sm:$0xff]
        %v678 = vld [vmem:[#allocation7 + $0x28] sm:$0xff]
        %v679 = vld [vmem:[#allocation7 + $0x30] sm:$0xff]
        %v680 = vld [vmem:[#allocation7 + $0x38] sm:$0xff]
        %v681 = vld [vmem:[#allocation7 + $0x40] sm:$0xff]
        %v682 = vld [vmem:[#allocation7 + $0x48] sm:$0xff]
        %v683 = vld [vmem:[#allocation7 + $0x50] sm:$0xff]
        %v684 = vld [vmem:[#allocation7 + $0x58] sm:$0xff]
        %v685 = vld [vmem:[#allocation7 + $0x60] sm:$0xff]
        %v686 = vld [vmem:[#allocation7 + $0x68] sm:$0xff]
        %v687 = vld [vmem:[#allocation7 + $0x70] sm:$0xff]
        %v688 = vld [vmem:[#allocation7 + $0x78] sm:$0xff]
        %s689 = scalar_lea.vmem [#allocation7], 128
        %v690 = vld [vmem:[%s689] sm:$0xff]
        %v691 = vld [vmem:[%s689 + $0x8] sm:$0xff]
        %v692 = vld [vmem:[%s689 + $0x10] sm:$0xff]
        %v693 = vld [vmem:[%s689 + $0x18] sm:$0xff]
        %v694 = vld [vmem:[%s689 + $0x20] sm:$0xff]
        %v695 = vld [vmem:[%s689 + $0x28] sm:$0xff]
        %v696 = vld [vmem:[%s689 + $0x30] sm:$0xff]
        %v697 = vld [vmem:[%s689 + $0x38] sm:$0xff]
        %v698 = vld [vmem:[%s689 + $0x40] sm:$0xff]
        %v699 = vld [vmem:[%s689 + $0x48] sm:$0xff]
        %v700 = vld [vmem:[%s689 + $0x50] sm:$0xff]
        %v701 = vld [vmem:[%s689 + $0x58] sm:$0xff]
        %v702 = vld [vmem:[%s689 + $0x60] sm:$0xff]
        %v703 = vld [vmem:[%s689 + $0x68] sm:$0xff]
        %v704 = vld [vmem:[%s689 + $0x70] sm:$0xff]
        %v705 = vld [vmem:[%s689 + $0x78] sm:$0xff]
        %706 = vmatprep.subr.mxu0 0.0
        %707 = vmatpush1.msra.mxu0 %v705
        %708 = vmatprep.subr.mxu0 0.0
        %709 = vmatpush1.msra.mxu0 %v704
        %710 = vmatprep.subr.mxu0 0.0
        %711 = vmatpush1.msra.mxu0 %v703
        %712 = vmatprep.subr.mxu0 0.0
        %713 = vmatpush1.msra.mxu0 %v702
        %714 = vmatprep.subr.mxu0 0.0
        %715 = vmatpush1.msra.mxu0 %v701
        %716 = vmatprep.subr.mxu0 0.0
        %717 = vmatpush1.msra.mxu0 %v700
        %718 = vmatprep.subr.mxu0 0.0
        %719 = vmatpush1.msra.mxu0 %v699
        %720 = vmatprep.subr.mxu0 0.0
        %721 = vmatpush1.msra.mxu0 %v698
        %722 = vmatprep.subr.mxu0 0.0
        %723 = vmatpush1.msra.mxu0 %v697
        %724 = vmatprep.subr.mxu0 0.0
        %725 = vmatpush1.msra.mxu0 %v696
        %726 = vmatprep.subr.mxu0 0.0
        %727 = vmatpush1.msra.mxu0 %v695
        %728 = vmatprep.subr.mxu0 0.0
        %729 = vmatpush1.msra.mxu0 %v694
        %730 = vmatprep.subr.mxu0 0.0
        %731 = vmatpush1.msra.mxu0 %v693
        %732 = vmatprep.subr.mxu0 0.0
        %733 = vmatpush1.msra.mxu0 %v692
        %734 = vmatprep.subr.mxu0 0.0
        %735 = vmatpush1.msra.mxu0 %v691
        %736 = vmatprep.subr.mxu0 0.0
        %737 = vmatpush1.msra.mxu0 %v690
        %738 = vmatprep.subr.mxu0 0.0
        %739 = vmatpush2.msra.mxu0 0.0
        %740 = vmatprep.subr.mxu0 0.0
        %741 = vmatpush2.msra.mxu0 0.0
        %742 = vmatprep.subr.mxu0 0.0
        %743 = vmatpush2.msra.mxu0 0.0
        %744 = vmatprep.subr.mxu0 0.0
        %745 = vmatpush2.msra.mxu0 0.0
        %746 = vmatprep.subr.mxu0 0.0
        %747 = vmatpush2.msra.mxu0 0.0
        %748 = vmatprep.subr.mxu0 0.0
        %749 = vmatpush2.msra.mxu0 0.0
        %750 = vmatprep.subr.mxu0 0.0
        %751 = vmatpush2.msra.mxu0 0.0
        %752 = vmatprep.subr.mxu0 0.0
        %753 = vmatpush2.msra.mxu0 0.0
        %754 = vmatprep.subr.mxu0 0.0
        %755 = vmatpush2.msra.mxu0 0.0
        %756 = vmatprep.subr.mxu0 0.0
        %757 = vmatpush2.msra.mxu0 0.0
        %758 = vmatprep.subr.mxu0 0.0
        %759 = vmatpush2.msra.mxu0 0.0
        %760 = vmatprep.subr.mxu0 0.0
        %761 = vmatpush2.msra.mxu0 0.0
        %762 = vmatprep.subr.mxu0 0.0
        %763 = vmatpush2.msra.mxu0 0.0
        %764 = vmatprep.subr.mxu0 0.0
        %765 = vmatpush2.msra.mxu0 0.0
        %766 = vmatprep.subr.mxu0 0.0
        %767 = vmatpush2.msra.mxu0 0.0
        %768 = vmatprep.subr.mxu0 0.0
        %769 = vmatpush2.msra.mxu0 0.0
        %770 = vmatprep.mubr.f32.mxu0 0.0
        %771 = vmatmul.mubr.f32.gmra.mxu0 %v600
        %v772 = vpop.f32.mrf.mxu0
        %v773 = vadd.f32 0.0, %v772
        %v774 = vpop.f32.mrf.mxu0
        %775 = vdwg.mxu0
        %776 = vmatprep.subr.mxu0 0.0
        %777 = vmatpush1.msra.mxu0 %v688
        %778 = vmatprep.subr.mxu0 0.0
        %779 = vmatpush1.msra.mxu0 %v687
        %780 = vmatprep.subr.mxu0 0.0
        %781 = vmatpush1.msra.mxu0 %v686
        %782 = vmatprep.subr.mxu0 0.0
        %783 = vmatpush1.msra.mxu0 %v685
        %784 = vmatprep.subr.mxu0 0.0
        %785 = vmatpush1.msra.mxu0 %v684
        %786 = vmatprep.subr.mxu0 0.0
        %787 = vmatpush1.msra.mxu0 %v683
        %788 = vmatprep.subr.mxu0 0.0
        %789 = vmatpush1.msra.mxu0 %v682
        %790 = vmatprep.subr.mxu0 0.0
        %791 = vmatpush1.msra.mxu0 %v681
        %792 = vmatprep.subr.mxu0 0.0
        %793 = vmatpush1.msra.mxu0 %v680
        %794 = vmatprep.subr.mxu0 0.0
        %795 = vmatpush1.msra.mxu0 %v679
        %796 = vmatprep.subr.mxu0 0.0
        %797 = vmatpush1.msra.mxu0 %v678
        %798 = vmatprep.subr.mxu0 0.0
        %799 = vmatpush1.msra.mxu0 %v677
        %800 = vmatprep.subr.mxu0 0.0
        %801 = vmatpush1.msra.mxu0 %v676
        %802 = vmatprep.subr.mxu0 0.0
        %803 = vmatpush1.msra.mxu0 %v675
        %804 = vmatprep.subr.mxu0 0.0
        %805 = vmatpush1.msra.mxu0 %v674
        %806 = vmatprep.subr.mxu0 0.0
        %807 = vmatpush1.msra.mxu0 %v673
        %808 = vmatprep.subr.mxu0 0.0
        %809 = vmatpush2.msra.mxu0 0.0
        %810 = vmatprep.subr.mxu0 0.0
        %811 = vmatpush2.msra.mxu0 0.0
        %812 = vmatprep.subr.mxu0 0.0
        %813 = vmatpush2.msra.mxu0 0.0
        %814 = vmatprep.subr.mxu0 0.0
        %815 = vmatpush2.msra.mxu0 0.0
        %816 = vmatprep.subr.mxu0 0.0
        %817 = vmatpush2.msra.mxu0 0.0
        %818 = vmatprep.subr.mxu0 0.0
        %819 = vmatpush2.msra.mxu0 0.0
        %820 = vmatprep.subr.mxu0 0.0
        %821 = vmatpush2.msra.mxu0 0.0
        %822 = vmatprep.subr.mxu0 0.0
        %823 = vmatpush2.msra.mxu0 0.0
        %824 = vmatprep.subr.mxu0 0.0
        %825 = vmatpush2.msra.mxu0 0.0
        %826 = vmatprep.subr.mxu0 0.0
        %827 = vmatpush2.msra.mxu0 0.0
        %828 = vmatprep.subr.mxu0 0.0
        %829 = vmatpush2.msra.mxu0 0.0
        %830 = vmatprep.subr.mxu0 0.0
        %831 = vmatpush2.msra.mxu0 0.0
        %832 = vmatprep.subr.mxu0 0.0
        %833 = vmatpush2.msra.mxu0 0.0
        %834 = vmatprep.subr.mxu0 0.0
        %835 = vmatpush2.msra.mxu0 0.0
        %836 = vmatprep.subr.mxu0 0.0
        %837 = vmatpush2.msra.mxu0 0.0
        %838 = vmatprep.subr.mxu0 0.0
        %839 = vmatpush2.msra.mxu0 0.0
        %840 = vmatprep.mubr.f32.mxu0 0.0
        %841 = vmatmul.mubr.f32.gmra.mxu0 %v595
        %v842 = vpop.f32.mrf.mxu0
        %v843 = vadd.f32 %v773, %v842
        %v844 = vpop.f32.mrf.mxu0
        %845 = vdwg.mxu0
        %s846 = scalar_lea.vmem [#allocation7], 256
        %v847 = vld [vmem:[%s846] sm:$0xff]
        %v848 = vld [vmem:[%s846 + $0x8] sm:$0xff]
        %v849 = vld [vmem:[%s846 + $0x10] sm:$0xff]
        %v850 = vld [vmem:[%s846 + $0x18] sm:$0xff]
        %v851 = vld [vmem:[%s846 + $0x20] sm:$0xff]
        %v852 = vld [vmem:[%s846 + $0x28] sm:$0xff]
        %v853 = vld [vmem:[%s846 + $0x30] sm:$0xff]
        %v854 = vld [vmem:[%s846 + $0x38] sm:$0xff]
        %v855 = vld [vmem:[%s846 + $0x40] sm:$0xff]
        %v856 = vld [vmem:[%s846 + $0x48] sm:$0xff]
        %v857 = vld [vmem:[%s846 + $0x50] sm:$0xff]
        %v858 = vld [vmem:[%s846 + $0x58] sm:$0xff]
        %v859 = vld [vmem:[%s846 + $0x60] sm:$0xff]
        %v860 = vld [vmem:[%s846 + $0x68] sm:$0xff]
        %v861 = vld [vmem:[%s846 + $0x70] sm:$0xff]
        %v862 = vld [vmem:[%s846 + $0x78] sm:$0xff]
        %863 = vmatprep.subr.mxu0 0.0
        %864 = vmatpush1.msra.mxu0 %v862
        %865 = vmatprep.subr.mxu0 0.0
        %866 = vmatpush1.msra.mxu0 %v861
        %867 = vmatprep.subr.mxu0 0.0
        %868 = vmatpush1.msra.mxu0 %v860
        %869 = vmatprep.subr.mxu0 0.0
        %870 = vmatpush1.msra.mxu0 %v859
        %871 = vmatprep.subr.mxu0 0.0
        %872 = vmatpush1.msra.mxu0 %v858
        %873 = vmatprep.subr.mxu0 0.0
        %874 = vmatpush1.msra.mxu0 %v857
        %875 = vmatprep.subr.mxu0 0.0
        %876 = vmatpush1.msra.mxu0 %v856
        %877 = vmatprep.subr.mxu0 0.0
        %878 = vmatpush1.msra.mxu0 %v855
        %879 = vmatprep.subr.mxu0 0.0
        %880 = vmatpush1.msra.mxu0 %v854
        %881 = vmatprep.subr.mxu0 0.0
        %882 = vmatpush1.msra.mxu0 %v853
        %883 = vmatprep.subr.mxu0 0.0
        %884 = vmatpush1.msra.mxu0 %v852
        %885 = vmatprep.subr.mxu0 0.0
        %886 = vmatpush1.msra.mxu0 %v851
        %887 = vmatprep.subr.mxu0 0.0
        %888 = vmatpush1.msra.mxu0 %v850
        %889 = vmatprep.subr.mxu0 0.0
        %890 = vmatpush1.msra.mxu0 %v849
        %891 = vmatprep.subr.mxu0 0.0
        %892 = vmatpush1.msra.mxu0 %v848
        %893 = vmatprep.subr.mxu0 0.0
        %894 = vmatpush1.msra.mxu0 %v847
        %895 = vmatprep.subr.mxu0 0.0
        %896 = vmatpush2.msra.mxu0 0.0
        %897 = vmatprep.subr.mxu0 0.0
        %898 = vmatpush2.msra.mxu0 0.0
        %899 = vmatprep.subr.mxu0 0.0
        %900 = vmatpush2.msra.mxu0 0.0
        %901 = vmatprep.subr.mxu0 0.0
        %902 = vmatpush2.msra.mxu0 0.0
        %903 = vmatprep.subr.mxu0 0.0
        %904 = vmatpush2.msra.mxu0 0.0
        %905 = vmatprep.subr.mxu0 0.0
        %906 = vmatpush2.msra.mxu0 0.0
        %907 = vmatprep.subr.mxu0 0.0
        %908 = vmatpush2.msra.mxu0 0.0
        %909 = vmatprep.subr.mxu0 0.0
        %910 = vmatpush2.msra.mxu0 0.0
        %911 = vmatprep.subr.mxu0 0.0
        %912 = vmatpush2.msra.mxu0 0.0
        %913 = vmatprep.subr.mxu0 0.0
        %914 = vmatpush2.msra.mxu0 0.0
        %915 = vmatprep.subr.mxu0 0.0
        %916 = vmatpush2.msra.mxu0 0.0
        %917 = vmatprep.subr.mxu0 0.0
        %918 = vmatpush2.msra.mxu0 0.0
        %919 = vmatprep.subr.mxu0 0.0
        %920 = vmatpush2.msra.mxu0 0.0
        %921 = vmatprep.subr.mxu0 0.0
        %922 = vmatpush2.msra.mxu0 0.0
        %923 = vmatprep.subr.mxu0 0.0
        %924 = vmatpush2.msra.mxu0 0.0
        %925 = vmatprep.subr.mxu0 0.0
        %926 = vmatpush2.msra.mxu0 0.0
        %927 = vmatprep.mubr.f32.mxu0 0.0
        %928 = vmatmul.mubr.f32.gmra.mxu0 %v605
        %v929 = vpop.f32.mrf.mxu0
        %v930 = vadd.f32 0.0, %v929
        %v931 = vpop.f32.mrf.mxu0
        %932 = vdwg.mxu0
        %v933 = vadd.f32 %v843, %v930
        %s934 = scalar_lea.vmem [#allocation7], 384
        %v935 = vld [vmem:[%s934] sm:$0xff]
        %v936 = vld [vmem:[%s934 + $0x8] sm:$0xff]
        %v937 = vld [vmem:[%s934 + $0x10] sm:$0xff]
        %v938 = vld [vmem:[%s934 + $0x18] sm:$0xff]
        %v939 = vld [vmem:[%s934 + $0x20] sm:$0xff]
        %v940 = vld [vmem:[%s934 + $0x28] sm:$0xff]
        %v941 = vld [vmem:[%s934 + $0x30] sm:$0xff]
        %v942 = vld [vmem:[%s934 + $0x38] sm:$0xff]
        %v943 = vld [vmem:[%s934 + $0x40] sm:$0xff]
        %v944 = vld [vmem:[%s934 + $0x48] sm:$0xff]
        %v945 = vld [vmem:[%s934 + $0x50] sm:$0xff]
        %v946 = vld [vmem:[%s934 + $0x58] sm:$0xff]
        %v947 = vld [vmem:[%s934 + $0x60] sm:$0xff]
        %v948 = vld [vmem:[%s934 + $0x68] sm:$0xff]
        %v949 = vld [vmem:[%s934 + $0x70] sm:$0xff]
        %v950 = vld [vmem:[%s934 + $0x78] sm:$0xff]
        %951 = vmatprep.subr.mxu0 0.0
        %952 = vmatpush1.msra.mxu0 %v950
        %953 = vmatprep.subr.mxu0 0.0
        %954 = vmatpush1.msra.mxu0 %v949
        %955 = vmatprep.subr.mxu0 0.0
        %956 = vmatpush1.msra.mxu0 %v948
        %957 = vmatprep.subr.mxu0 0.0
        %958 = vmatpush1.msra.mxu0 %v947
        %959 = vmatprep.subr.mxu0 0.0
        %960 = vmatpush1.msra.mxu0 %v946
        %961 = vmatprep.subr.mxu0 0.0
        %962 = vmatpush1.msra.mxu0 %v945
        %963 = vmatprep.subr.mxu0 0.0
        %964 = vmatpush1.msra.mxu0 %v944
        %965 = vmatprep.subr.mxu0 0.0
        %966 = vmatpush1.msra.mxu0 %v943
        %967 = vmatprep.subr.mxu0 0.0
        %968 = vmatpush1.msra.mxu0 %v942
        %969 = vmatprep.subr.mxu0 0.0
        %970 = vmatpush1.msra.mxu0 %v941
        %971 = vmatprep.subr.mxu0 0.0
        %972 = vmatpush1.msra.mxu0 %v940
        %973 = vmatprep.subr.mxu0 0.0
        %974 = vmatpush1.msra.mxu0 %v939
        %975 = vmatprep.subr.mxu0 0.0
        %976 = vmatpush1.msra.mxu0 %v938
        %977 = vmatprep.subr.mxu0 0.0
        %978 = vmatpush1.msra.mxu0 %v937
        %979 = vmatprep.subr.mxu0 0.0
        %980 = vmatpush1.msra.mxu0 %v936
        %981 = vmatprep.subr.mxu0 0.0
        %982 = vmatpush1.msra.mxu0 %v935
        %983 = vmatprep.subr.mxu0 0.0
        %984 = vmatpush2.msra.mxu0 0.0
        %985 = vmatprep.subr.mxu0 0.0
        %986 = vmatpush2.msra.mxu0 0.0
        %987 = vmatprep.subr.mxu0 0.0
        %988 = vmatpush2.msra.mxu0 0.0
        %989 = vmatprep.subr.mxu0 0.0
        %990 = vmatpush2.msra.mxu0 0.0
        %991 = vmatprep.subr.mxu0 0.0
        %992 = vmatpush2.msra.mxu0 0.0
        %993 = vmatprep.subr.mxu0 0.0
        %994 = vmatpush2.msra.mxu0 0.0
        %995 = vmatprep.subr.mxu0 0.0
        %996 = vmatpush2.msra.mxu0 0.0
        %997 = vmatprep.subr.mxu0 0.0
        %998 = vmatpush2.msra.mxu0 0.0
        %999 = vmatprep.subr.mxu0 0.0
        %1000 = vmatpush2.msra.mxu0 0.0
        %1001 = vmatprep.subr.mxu0 0.0
        %1002 = vmatpush2.msra.mxu0 0.0
        %1003 = vmatprep.subr.mxu0 0.0
        %1004 = vmatpush2.msra.mxu0 0.0
        %1005 = vmatprep.subr.mxu0 0.0
        %1006 = vmatpush2.msra.mxu0 0.0
        %1007 = vmatprep.subr.mxu0 0.0
        %1008 = vmatpush2.msra.mxu0 0.0
        %1009 = vmatprep.subr.mxu0 0.0
        %1010 = vmatpush2.msra.mxu0 0.0
        %1011 = vmatprep.subr.mxu0 0.0
        %1012 = vmatpush2.msra.mxu0 0.0
        %1013 = vmatprep.subr.mxu0 0.0
        %1014 = vmatpush2.msra.mxu0 0.0
        %1015 = vmatprep.mubr.f32.mxu0 0.0
        %1016 = vmatmul.mubr.f32.gmra.mxu0 %v610
        %v1017 = vpop.f32.mrf.mxu0
        %v1018 = vadd.f32 0.0, %v1017
        %v1019 = vpop.f32.mrf.mxu0
        %1020 = vdwg.mxu0
        %v1021 = vadd.f32 %v933, %v1018
        %s1022 = scalar_lea.vmem [#allocation7], 512
        %v1023 = vld [vmem:[%s1022] sm:$0xff]
        %v1024 = vld [vmem:[%s1022 + $0x8] sm:$0xff]
        %v1025 = vld [vmem:[%s1022 + $0x10] sm:$0xff]
        %v1026 = vld [vmem:[%s1022 + $0x18] sm:$0xff]
        %v1027 = vld [vmem:[%s1022 + $0x20] sm:$0xff]
        %v1028 = vld [vmem:[%s1022 + $0x28] sm:$0xff]
        %v1029 = vld [vmem:[%s1022 + $0x30] sm:$0xff]
        %v1030 = vld [vmem:[%s1022 + $0x38] sm:$0xff]
        %v1031 = vld [vmem:[%s1022 + $0x40] sm:$0xff]
        %v1032 = vld [vmem:[%s1022 + $0x48] sm:$0xff]
        %v1033 = vld [vmem:[%s1022 + $0x50] sm:$0xff]
        %v1034 = vld [vmem:[%s1022 + $0x58] sm:$0xff]
        %v1035 = vld [vmem:[%s1022 + $0x60] sm:$0xff]
        %v1036 = vld [vmem:[%s1022 + $0x68] sm:$0xff]
        %v1037 = vld [vmem:[%s1022 + $0x70] sm:$0xff]
        %v1038 = vld [vmem:[%s1022 + $0x78] sm:$0xff]
        %1039 = vmatprep.subr.mxu0 0.0
        %1040 = vmatpush1.msra.mxu0 %v1038
        %1041 = vmatprep.subr.mxu0 0.0
        %1042 = vmatpush1.msra.mxu0 %v1037
        %1043 = vmatprep.subr.mxu0 0.0
        %1044 = vmatpush1.msra.mxu0 %v1036
        %1045 = vmatprep.subr.mxu0 0.0
        %1046 = vmatpush1.msra.mxu0 %v1035
        %1047 = vmatprep.subr.mxu0 0.0
        %1048 = vmatpush1.msra.mxu0 %v1034
        %1049 = vmatprep.subr.mxu0 0.0
        %1050 = vmatpush1.msra.mxu0 %v1033
        %1051 = vmatprep.subr.mxu0 0.0
        %1052 = vmatpush1.msra.mxu0 %v1032
        %1053 = vmatprep.subr.mxu0 0.0
        %1054 = vmatpush1.msra.mxu0 %v1031
        %1055 = vmatprep.subr.mxu0 0.0
        %1056 = vmatpush1.msra.mxu0 %v1030
        %1057 = vmatprep.subr.mxu0 0.0
        %1058 = vmatpush1.msra.mxu0 %v1029
        %1059 = vmatprep.subr.mxu0 0.0
        %1060 = vmatpush1.msra.mxu0 %v1028
        %1061 = vmatprep.subr.mxu0 0.0
        %1062 = vmatpush1.msra.mxu0 %v1027
        %1063 = vmatprep.subr.mxu0 0.0
        %1064 = vmatpush1.msra.mxu0 %v1026
        %1065 = vmatprep.subr.mxu0 0.0
        %1066 = vmatpush1.msra.mxu0 %v1025
        %1067 = vmatprep.subr.mxu0 0.0
        %1068 = vmatpush1.msra.mxu0 %v1024
        %1069 = vmatprep.subr.mxu0 0.0
        %1070 = vmatpush1.msra.mxu0 %v1023
        %1071 = vmatprep.subr.mxu0 0.0
        %1072 = vmatpush2.msra.mxu0 0.0
        %1073 = vmatprep.subr.mxu0 0.0
        %1074 = vmatpush2.msra.mxu0 0.0
        %1075 = vmatprep.subr.mxu0 0.0
        %1076 = vmatpush2.msra.mxu0 0.0
        %1077 = vmatprep.subr.mxu0 0.0
        %1078 = vmatpush2.msra.mxu0 0.0
        %1079 = vmatprep.subr.mxu0 0.0
        %1080 = vmatpush2.msra.mxu0 0.0
        %1081 = vmatprep.subr.mxu0 0.0
        %1082 = vmatpush2.msra.mxu0 0.0
        %1083 = vmatprep.subr.mxu0 0.0
        %1084 = vmatpush2.msra.mxu0 0.0
        %1085 = vmatprep.subr.mxu0 0.0
        %1086 = vmatpush2.msra.mxu0 0.0
        %1087 = vmatprep.subr.mxu0 0.0
        %1088 = vmatpush2.msra.mxu0 0.0
        %1089 = vmatprep.subr.mxu0 0.0
        %1090 = vmatpush2.msra.mxu0 0.0
        %1091 = vmatprep.subr.mxu0 0.0
        %1092 = vmatpush2.msra.mxu0 0.0
        %1093 = vmatprep.subr.mxu0 0.0
        %1094 = vmatpush2.msra.mxu0 0.0
        %1095 = vmatprep.subr.mxu0 0.0
        %1096 = vmatpush2.msra.mxu0 0.0
        %1097 = vmatprep.subr.mxu0 0.0
        %1098 = vmatpush2.msra.mxu0 0.0
        %1099 = vmatprep.subr.mxu0 0.0
        %1100 = vmatpush2.msra.mxu0 0.0
        %1101 = vmatprep.subr.mxu0 0.0
        %1102 = vmatpush2.msra.mxu0 0.0
        %1103 = vmatprep.mubr.f32.mxu0 0.0
        %1104 = vmatmul.mubr.f32.gmra.mxu0 %v615
        %v1105 = vpop.f32.mrf.mxu0
        %v1106 = vadd.f32 0.0, %v1105
        %v1107 = vpop.f32.mrf.mxu0
        %1108 = vdwg.mxu0
        %v1109 = vadd.f32 %v1021, %v1106
        %s1110 = scalar_lea.vmem [#allocation7], 640
        %v1111 = vld [vmem:[%s1110] sm:$0xff]
        %v1112 = vld [vmem:[%s1110 + $0x8] sm:$0xff]
        %v1113 = vld [vmem:[%s1110 + $0x10] sm:$0xff]
        %v1114 = vld [vmem:[%s1110 + $0x18] sm:$0xff]
        %v1115 = vld [vmem:[%s1110 + $0x20] sm:$0xff]
        %v1116 = vld [vmem:[%s1110 + $0x28] sm:$0xff]
        %v1117 = vld [vmem:[%s1110 + $0x30] sm:$0xff]
        %v1118 = vld [vmem:[%s1110 + $0x38] sm:$0xff]
        %v1119 = vld [vmem:[%s1110 + $0x40] sm:$0xff]
        %v1120 = vld [vmem:[%s1110 + $0x48] sm:$0xff]
        %v1121 = vld [vmem:[%s1110 + $0x50] sm:$0xff]
        %v1122 = vld [vmem:[%s1110 + $0x58] sm:$0xff]
        %v1123 = vld [vmem:[%s1110 + $0x60] sm:$0xff]
        %v1124 = vld [vmem:[%s1110 + $0x68] sm:$0xff]
        %v1125 = vld [vmem:[%s1110 + $0x70] sm:$0xff]
        %v1126 = vld [vmem:[%s1110 + $0x78] sm:$0xff]
        %1127 = vmatprep.subr.mxu0 0.0
        %1128 = vmatpush1.msra.mxu0 %v1126
        %1129 = vmatprep.subr.mxu0 0.0
        %1130 = vmatpush1.msra.mxu0 %v1125
        %1131 = vmatprep.subr.mxu0 0.0
        %1132 = vmatpush1.msra.mxu0 %v1124
        %1133 = vmatprep.subr.mxu0 0.0
        %1134 = vmatpush1.msra.mxu0 %v1123
        %1135 = vmatprep.subr.mxu0 0.0
        %1136 = vmatpush1.msra.mxu0 %v1122
        %1137 = vmatprep.subr.mxu0 0.0
        %1138 = vmatpush1.msra.mxu0 %v1121
        %1139 = vmatprep.subr.mxu0 0.0
        %1140 = vmatpush1.msra.mxu0 %v1120
        %1141 = vmatprep.subr.mxu0 0.0
        %1142 = vmatpush1.msra.mxu0 %v1119
        %1143 = vmatprep.subr.mxu0 0.0
        %1144 = vmatpush1.msra.mxu0 %v1118
        %1145 = vmatprep.subr.mxu0 0.0
        %1146 = vmatpush1.msra.mxu0 %v1117
        %1147 = vmatprep.subr.mxu0 0.0
        %1148 = vmatpush1.msra.mxu0 %v1116
        %1149 = vmatprep.subr.mxu0 0.0
        %1150 = vmatpush1.msra.mxu0 %v1115
        %1151 = vmatprep.subr.mxu0 0.0
        %1152 = vmatpush1.msra.mxu0 %v1114
        %1153 = vmatprep.subr.mxu0 0.0
        %1154 = vmatpush1.msra.mxu0 %v1113
        %1155 = vmatprep.subr.mxu0 0.0
        %1156 = vmatpush1.msra.mxu0 %v1112
        %1157 = vmatprep.subr.mxu0 0.0
        %1158 = vmatpush1.msra.mxu0 %v1111
        %1159 = vmatprep.subr.mxu0 0.0
        %1160 = vmatpush2.msra.mxu0 0.0
        %1161 = vmatprep.subr.mxu0 0.0
        %1162 = vmatpush2.msra.mxu0 0.0
        %1163 = vmatprep.subr.mxu0 0.0
        %1164 = vmatpush2.msra.mxu0 0.0
        %1165 = vmatprep.subr.mxu0 0.0
        %1166 = vmatpush2.msra.mxu0 0.0
        %1167 = vmatprep.subr.mxu0 0.0
        %1168 = vmatpush2.msra.mxu0 0.0
        %1169 = vmatprep.subr.mxu0 0.0
        %1170 = vmatpush2.msra.mxu0 0.0
        %1171 = vmatprep.subr.mxu0 0.0
        %1172 = vmatpush2.msra.mxu0 0.0
        %1173 = vmatprep.subr.mxu0 0.0
        %1174 = vmatpush2.msra.mxu0 0.0
        %1175 = vmatprep.subr.mxu0 0.0
        %1176 = vmatpush2.msra.mxu0 0.0
        %1177 = vmatprep.subr.mxu0 0.0
        %1178 = vmatpush2.msra.mxu0 0.0
        %1179 = vmatprep.subr.mxu0 0.0
        %1180 = vmatpush2.msra.mxu0 0.0
        %1181 = vmatprep.subr.mxu0 0.0
        %1182 = vmatpush2.msra.mxu0 0.0
        %1183 = vmatprep.subr.mxu0 0.0
        %1184 = vmatpush2.msra.mxu0 0.0
        %1185 = vmatprep.subr.mxu0 0.0
        %1186 = vmatpush2.msra.mxu0 0.0
        %1187 = vmatprep.subr.mxu0 0.0
        %1188 = vmatpush2.msra.mxu0 0.0
        %1189 = vmatprep.subr.mxu0 0.0
        %1190 = vmatpush2.msra.mxu0 0.0
        %1191 = vmatprep.mubr.f32.mxu0 0.0
        %1192 = vmatmul.mubr.f32.gmra.mxu0 %v620
        %v1193 = vpop.f32.mrf.mxu0
        %v1194 = vadd.f32 0.0, %v1193
        %v1195 = vpop.f32.mrf.mxu0
        %1196 = vdwg.mxu0
        %v1197 = vadd.f32 %v1109, %v1194
        %s1198 = scalar_lea.vmem [#allocation7], 768
        %v1199 = vld [vmem:[%s1198] sm:$0xff]
        %v1200 = vld [vmem:[%s1198 + $0x8] sm:$0xff]
        %v1201 = vld [vmem:[%s1198 + $0x10] sm:$0xff]
        %v1202 = vld [vmem:[%s1198 + $0x18] sm:$0xff]
        %v1203 = vld [vmem:[%s1198 + $0x20] sm:$0xff]
        %v1204 = vld [vmem:[%s1198 + $0x28] sm:$0xff]
        %v1205 = vld [vmem:[%s1198 + $0x30] sm:$0xff]
        %v1206 = vld [vmem:[%s1198 + $0x38] sm:$0xff]
        %v1207 = vld [vmem:[%s1198 + $0x40] sm:$0xff]
        %v1208 = vld [vmem:[%s1198 + $0x48] sm:$0xff]
        %v1209 = vld [vmem:[%s1198 + $0x50] sm:$0xff]
        %v1210 = vld [vmem:[%s1198 + $0x58] sm:$0xff]
        %v1211 = vld [vmem:[%s1198 + $0x60] sm:$0xff]
        %v1212 = vld [vmem:[%s1198 + $0x68] sm:$0xff]
        %v1213 = vld [vmem:[%s1198 + $0x70] sm:$0xff]
        %v1214 = vld [vmem:[%s1198 + $0x78] sm:$0xff]
        %1215 = vmatprep.subr.mxu0 0.0
        %1216 = vmatpush1.msra.mxu0 %v1214
        %1217 = vmatprep.subr.mxu0 0.0
        %1218 = vmatpush1.msra.mxu0 %v1213
        %1219 = vmatprep.subr.mxu0 0.0
        %1220 = vmatpush1.msra.mxu0 %v1212
        %1221 = vmatprep.subr.mxu0 0.0
        %1222 = vmatpush1.msra.mxu0 %v1211
        %1223 = vmatprep.subr.mxu0 0.0
        %1224 = vmatpush1.msra.mxu0 %v1210
        %1225 = vmatprep.subr.mxu0 0.0
        %1226 = vmatpush1.msra.mxu0 %v1209
        %1227 = vmatprep.subr.mxu0 0.0
        %1228 = vmatpush1.msra.mxu0 %v1208
        %1229 = vmatprep.subr.mxu0 0.0
        %1230 = vmatpush1.msra.mxu0 %v1207
        %1231 = vmatprep.subr.mxu0 0.0
        %1232 = vmatpush1.msra.mxu0 %v1206
        %1233 = vmatprep.subr.mxu0 0.0
        %1234 = vmatpush1.msra.mxu0 %v1205
        %1235 = vmatprep.subr.mxu0 0.0
        %1236 = vmatpush1.msra.mxu0 %v1204
        %1237 = vmatprep.subr.mxu0 0.0
        %1238 = vmatpush1.msra.mxu0 %v1203
        %1239 = vmatprep.subr.mxu0 0.0
        %1240 = vmatpush1.msra.mxu0 %v1202
        %1241 = vmatprep.subr.mxu0 0.0
        %1242 = vmatpush1.msra.mxu0 %v1201
        %1243 = vmatprep.subr.mxu0 0.0
        %1244 = vmatpush1.msra.mxu0 %v1200
        %1245 = vmatprep.subr.mxu0 0.0
        %1246 = vmatpush1.msra.mxu0 %v1199
        %1247 = vmatprep.subr.mxu0 0.0
        %1248 = vmatpush2.msra.mxu0 0.0
        %1249 = vmatprep.subr.mxu0 0.0
        %1250 = vmatpush2.msra.mxu0 0.0
        %1251 = vmatprep.subr.mxu0 0.0
        %1252 = vmatpush2.msra.mxu0 0.0
        %1253 = vmatprep.subr.mxu0 0.0
        %1254 = vmatpush2.msra.mxu0 0.0
        %1255 = vmatprep.subr.mxu0 0.0
        %1256 = vmatpush2.msra.mxu0 0.0
        %1257 = vmatprep.subr.mxu0 0.0
        %1258 = vmatpush2.msra.mxu0 0.0
        %1259 = vmatprep.subr.mxu0 0.0
        %1260 = vmatpush2.msra.mxu0 0.0
        %1261 = vmatprep.subr.mxu0 0.0
        %1262 = vmatpush2.msra.mxu0 0.0
        %1263 = vmatprep.subr.mxu0 0.0
        %1264 = vmatpush2.msra.mxu0 0.0
        %1265 = vmatprep.subr.mxu0 0.0
        %1266 = vmatpush2.msra.mxu0 0.0
        %1267 = vmatprep.subr.mxu0 0.0
        %1268 = vmatpush2.msra.mxu0 0.0
        %1269 = vmatprep.subr.mxu0 0.0
        %1270 = vmatpush2.msra.mxu0 0.0
        %1271 = vmatprep.subr.mxu0 0.0
        %1272 = vmatpush2.msra.mxu0 0.0
        %1273 = vmatprep.subr.mxu0 0.0
        %1274 = vmatpush2.msra.mxu0 0.0
        %1275 = vmatprep.subr.mxu0 0.0
        %1276 = vmatpush2.msra.mxu0 0.0
        %1277 = vmatprep.subr.mxu0 0.0
        %1278 = vmatpush2.msra.mxu0 0.0
        %1279 = vmatprep.mubr.f32.mxu0 0.0
        %1280 = vmatmul.mubr.f32.gmra.mxu0 %v625
        %v1281 = vpop.f32.mrf.mxu0
        %v1282 = vadd.f32 0.0, %v1281
        %v1283 = vpop.f32.mrf.mxu0
        %1284 = vdwg.mxu0
        %v1285 = vadd.f32 %v1197, %v1282
        %s1286 = scalar_lea.vmem [#allocation7], 896
        %v1287 = vld [vmem:[%s1286] sm:$0xff]
        %v1288 = vld [vmem:[%s1286 + $0x8] sm:$0xff]
        %v1289 = vld [vmem:[%s1286 + $0x10] sm:$0xff]
        %v1290 = vld [vmem:[%s1286 + $0x18] sm:$0xff]
        %v1291 = vld [vmem:[%s1286 + $0x20] sm:$0xff]
        %v1292 = vld [vmem:[%s1286 + $0x28] sm:$0xff]
        %v1293 = vld [vmem:[%s1286 + $0x30] sm:$0xff]
        %v1294 = vld [vmem:[%s1286 + $0x38] sm:$0xff]
        %v1295 = vld [vmem:[%s1286 + $0x40] sm:$0xff]
        %v1296 = vld [vmem:[%s1286 + $0x48] sm:$0xff]
        %v1297 = vld [vmem:[%s1286 + $0x50] sm:$0xff]
        %v1298 = vld [vmem:[%s1286 + $0x58] sm:$0xff]
        %v1299 = vld [vmem:[%s1286 + $0x60] sm:$0xff]
        %v1300 = vld [vmem:[%s1286 + $0x68] sm:$0xff]
        %v1301 = vld [vmem:[%s1286 + $0x70] sm:$0xff]
        %v1302 = vld [vmem:[%s1286 + $0x78] sm:$0xff]
        %1303 = vmatprep.subr.mxu0 0.0
        %1304 = vmatpush1.msra.mxu0 %v1302
        %1305 = vmatprep.subr.mxu0 0.0
        %1306 = vmatpush1.msra.mxu0 %v1301
        %1307 = vmatprep.subr.mxu0 0.0
        %1308 = vmatpush1.msra.mxu0 %v1300
        %1309 = vmatprep.subr.mxu0 0.0
        %1310 = vmatpush1.msra.mxu0 %v1299
        %1311 = vmatprep.subr.mxu0 0.0
        %1312 = vmatpush1.msra.mxu0 %v1298
        %1313 = vmatprep.subr.mxu0 0.0
        %1314 = vmatpush1.msra.mxu0 %v1297
        %1315 = vmatprep.subr.mxu0 0.0
        %1316 = vmatpush1.msra.mxu0 %v1296
        %1317 = vmatprep.subr.mxu0 0.0
        %1318 = vmatpush1.msra.mxu0 %v1295
        %1319 = vmatprep.subr.mxu0 0.0
        %1320 = vmatpush1.msra.mxu0 %v1294
        %1321 = vmatprep.subr.mxu0 0.0
        %1322 = vmatpush1.msra.mxu0 %v1293
        %1323 = vmatprep.subr.mxu0 0.0
        %1324 = vmatpush1.msra.mxu0 %v1292
        %1325 = vmatprep.subr.mxu0 0.0
        %1326 = vmatpush1.msra.mxu0 %v1291
        %1327 = vmatprep.subr.mxu0 0.0
        %1328 = vmatpush1.msra.mxu0 %v1290
        %1329 = vmatprep.subr.mxu0 0.0
        %1330 = vmatpush1.msra.mxu0 %v1289
        %1331 = vmatprep.subr.mxu0 0.0
        %1332 = vmatpush1.msra.mxu0 %v1288
        %1333 = vmatprep.subr.mxu0 0.0
        %1334 = vmatpush1.msra.mxu0 %v1287
        %1335 = vmatprep.subr.mxu0 0.0
        %1336 = vmatpush2.msra.mxu0 0.0
        %1337 = vmatprep.subr.mxu0 0.0
        %1338 = vmatpush2.msra.mxu0 0.0
        %1339 = vmatprep.subr.mxu0 0.0
        %1340 = vmatpush2.msra.mxu0 0.0
        %1341 = vmatprep.subr.mxu0 0.0
        %1342 = vmatpush2.msra.mxu0 0.0
        %1343 = vmatprep.subr.mxu0 0.0
        %1344 = vmatpush2.msra.mxu0 0.0
        %1345 = vmatprep.subr.mxu0 0.0
        %1346 = vmatpush2.msra.mxu0 0.0
        %1347 = vmatprep.subr.mxu0 0.0
        %1348 = vmatpush2.msra.mxu0 0.0
        %1349 = vmatprep.subr.mxu0 0.0
        %1350 = vmatpush2.msra.mxu0 0.0
        %1351 = vmatprep.subr.mxu0 0.0
        %1352 = vmatpush2.msra.mxu0 0.0
        %1353 = vmatprep.subr.mxu0 0.0
        %1354 = vmatpush2.msra.mxu0 0.0
        %1355 = vmatprep.subr.mxu0 0.0
        %1356 = vmatpush2.msra.mxu0 0.0
        %1357 = vmatprep.subr.mxu0 0.0
        %1358 = vmatpush2.msra.mxu0 0.0
        %1359 = vmatprep.subr.mxu0 0.0
        %1360 = vmatpush2.msra.mxu0 0.0
        %1361 = vmatprep.subr.mxu0 0.0
        %1362 = vmatpush2.msra.mxu0 0.0
        %1363 = vmatprep.subr.mxu0 0.0
        %1364 = vmatpush2.msra.mxu0 0.0
        %1365 = vmatprep.subr.mxu0 0.0
        %1366 = vmatpush2.msra.mxu0 0.0
        %1367 = vmatprep.mubr.f32.mxu0 0.0
        %1368 = vmatmul.mubr.f32.gmra.mxu0 %v630
        %v1369 = vpop.f32.mrf.mxu0
        %v1370 = vadd.f32 0.0, %v1369
        %v1371 = vpop.f32.mrf.mxu0
        %1372 = vdwg.mxu0
        %v1373 = vadd.f32 %v1285, %v1370
        %s1374 = scalar_lea.vmem [#allocation7], 1024
        %v1375 = vld [vmem:[%s1374] sm:$0xff]
        %v1376 = vld [vmem:[%s1374 + $0x8] sm:$0xff]
        %v1377 = vld [vmem:[%s1374 + $0x10] sm:$0xff]
        %v1378 = vld [vmem:[%s1374 + $0x18] sm:$0xff]
        %v1379 = vld [vmem:[%s1374 + $0x20] sm:$0xff]
        %v1380 = vld [vmem:[%s1374 + $0x28] sm:$0xff]
        %v1381 = vld [vmem:[%s1374 + $0x30] sm:$0xff]
        %v1382 = vld [vmem:[%s1374 + $0x38] sm:$0xff]
        %v1383 = vld [vmem:[%s1374 + $0x40] sm:$0xff]
        %v1384 = vld [vmem:[%s1374 + $0x48] sm:$0xff]
        %v1385 = vld [vmem:[%s1374 + $0x50] sm:$0xff]
        %v1386 = vld [vmem:[%s1374 + $0x58] sm:$0xff]
        %v1387 = vld [vmem:[%s1374 + $0x60] sm:$0xff]
        %v1388 = vld [vmem:[%s1374 + $0x68] sm:$0xff]
        %v1389 = vld [vmem:[%s1374 + $0x70] sm:$0xff]
        %v1390 = vld [vmem:[%s1374 + $0x78] sm:$0xff]
        %1391 = vmatprep.subr.mxu0 0.0
        %1392 = vmatpush1.msra.mxu0 %v1390
        %1393 = vmatprep.subr.mxu0 0.0
        %1394 = vmatpush1.msra.mxu0 %v1389
        %1395 = vmatprep.subr.mxu0 0.0
        %1396 = vmatpush1.msra.mxu0 %v1388
        %1397 = vmatprep.subr.mxu0 0.0
        %1398 = vmatpush1.msra.mxu0 %v1387
        %1399 = vmatprep.subr.mxu0 0.0
        %1400 = vmatpush1.msra.mxu0 %v1386
        %1401 = vmatprep.subr.mxu0 0.0
        %1402 = vmatpush1.msra.mxu0 %v1385
        %1403 = vmatprep.subr.mxu0 0.0
        %1404 = vmatpush1.msra.mxu0 %v1384
        %1405 = vmatprep.subr.mxu0 0.0
        %1406 = vmatpush1.msra.mxu0 %v1383
        %1407 = vmatprep.subr.mxu0 0.0
        %1408 = vmatpush1.msra.mxu0 %v1382
        %1409 = vmatprep.subr.mxu0 0.0
        %1410 = vmatpush1.msra.mxu0 %v1381
        %1411 = vmatprep.subr.mxu0 0.0
        %1412 = vmatpush1.msra.mxu0 %v1380
        %1413 = vmatprep.subr.mxu0 0.0
        %1414 = vmatpush1.msra.mxu0 %v1379
        %1415 = vmatprep.subr.mxu0 0.0
        %1416 = vmatpush1.msra.mxu0 %v1378
        %1417 = vmatprep.subr.mxu0 0.0
        %1418 = vmatpush1.msra.mxu0 %v1377
        %1419 = vmatprep.subr.mxu0 0.0
        %1420 = vmatpush1.msra.mxu0 %v1376
        %1421 = vmatprep.subr.mxu0 0.0
        %1422 = vmatpush1.msra.mxu0 %v1375
        %1423 = vmatprep.subr.mxu0 0.0
        %1424 = vmatpush2.msra.mxu0 0.0
        %1425 = vmatprep.subr.mxu0 0.0
        %1426 = vmatpush2.msra.mxu0 0.0
        %1427 = vmatprep.subr.mxu0 0.0
        %1428 = vmatpush2.msra.mxu0 0.0
        %1429 = vmatprep.subr.mxu0 0.0
        %1430 = vmatpush2.msra.mxu0 0.0
        %1431 = vmatprep.subr.mxu0 0.0
        %1432 = vmatpush2.msra.mxu0 0.0
        %1433 = vmatprep.subr.mxu0 0.0
        %1434 = vmatpush2.msra.mxu0 0.0
        %1435 = vmatprep.subr.mxu0 0.0
        %1436 = vmatpush2.msra.mxu0 0.0
        %1437 = vmatprep.subr.mxu0 0.0
        %1438 = vmatpush2.msra.mxu0 0.0
        %1439 = vmatprep.subr.mxu0 0.0
        %1440 = vmatpush2.msra.mxu0 0.0
        %1441 = vmatprep.subr.mxu0 0.0
        %1442 = vmatpush2.msra.mxu0 0.0
        %1443 = vmatprep.subr.mxu0 0.0
        %1444 = vmatpush2.msra.mxu0 0.0
        %1445 = vmatprep.subr.mxu0 0.0
        %1446 = vmatpush2.msra.mxu0 0.0
        %1447 = vmatprep.subr.mxu0 0.0
        %1448 = vmatpush2.msra.mxu0 0.0
        %1449 = vmatprep.subr.mxu0 0.0
        %1450 = vmatpush2.msra.mxu0 0.0
        %1451 = vmatprep.subr.mxu0 0.0
        %1452 = vmatpush2.msra.mxu0 0.0
        %1453 = vmatprep.subr.mxu0 0.0
        %1454 = vmatpush2.msra.mxu0 0.0
        %1455 = vmatprep.mubr.f32.mxu0 0.0
        %1456 = vmatmul.mubr.f32.gmra.mxu0 %v635
        %v1457 = vpop.f32.mrf.mxu0
        %v1458 = vadd.f32 0.0, %v1457
        %v1459 = vpop.f32.mrf.mxu0
        %1460 = vdwg.mxu0
        %v1461 = vadd.f32 %v1373, %v1458
        %s1462 = scalar_lea.vmem [#allocation7], 1152
        %v1463 = vld [vmem:[%s1462] sm:$0xff]
        %v1464 = vld [vmem:[%s1462 + $0x8] sm:$0xff]
        %v1465 = vld [vmem:[%s1462 + $0x10] sm:$0xff]
        %v1466 = vld [vmem:[%s1462 + $0x18] sm:$0xff]
        %v1467 = vld [vmem:[%s1462 + $0x20] sm:$0xff]
        %v1468 = vld [vmem:[%s1462 + $0x28] sm:$0xff]
        %v1469 = vld [vmem:[%s1462 + $0x30] sm:$0xff]
        %v1470 = vld [vmem:[%s1462 + $0x38] sm:$0xff]
        %v1471 = vld [vmem:[%s1462 + $0x40] sm:$0xff]
        %v1472 = vld [vmem:[%s1462 + $0x48] sm:$0xff]
        %v1473 = vld [vmem:[%s1462 + $0x50] sm:$0xff]
        %v1474 = vld [vmem:[%s1462 + $0x58] sm:$0xff]
        %v1475 = vld [vmem:[%s1462 + $0x60] sm:$0xff]
        %v1476 = vld [vmem:[%s1462 + $0x68] sm:$0xff]
        %v1477 = vld [vmem:[%s1462 + $0x70] sm:$0xff]
        %v1478 = vld [vmem:[%s1462 + $0x78] sm:$0xff]
        %1479 = vmatprep.subr.mxu0 0.0
        %1480 = vmatpush1.msra.mxu0 %v1478
        %1481 = vmatprep.subr.mxu0 0.0
        %1482 = vmatpush1.msra.mxu0 %v1477
        %1483 = vmatprep.subr.mxu0 0.0
        %1484 = vmatpush1.msra.mxu0 %v1476
        %1485 = vmatprep.subr.mxu0 0.0
        %1486 = vmatpush1.msra.mxu0 %v1475
        %1487 = vmatprep.subr.mxu0 0.0
        %1488 = vmatpush1.msra.mxu0 %v1474
        %1489 = vmatprep.subr.mxu0 0.0
        %1490 = vmatpush1.msra.mxu0 %v1473
        %1491 = vmatprep.subr.mxu0 0.0
        %1492 = vmatpush1.msra.mxu0 %v1472
        %1493 = vmatprep.subr.mxu0 0.0
        %1494 = vmatpush1.msra.mxu0 %v1471
        %1495 = vmatprep.subr.mxu0 0.0
        %1496 = vmatpush1.msra.mxu0 %v1470
        %1497 = vmatprep.subr.mxu0 0.0
        %1498 = vmatpush1.msra.mxu0 %v1469
        %1499 = vmatprep.subr.mxu0 0.0
        %1500 = vmatpush1.msra.mxu0 %v1468
        %1501 = vmatprep.subr.mxu0 0.0
        %1502 = vmatpush1.msra.mxu0 %v1467
        %1503 = vmatprep.subr.mxu0 0.0
        %1504 = vmatpush1.msra.mxu0 %v1466
        %1505 = vmatprep.subr.mxu0 0.0
        %1506 = vmatpush1.msra.mxu0 %v1465
        %1507 = vmatprep.subr.mxu0 0.0
        %1508 = vmatpush1.msra.mxu0 %v1464
        %1509 = vmatprep.subr.mxu0 0.0
        %1510 = vmatpush1.msra.mxu0 %v1463
        %1511 = vmatprep.subr.mxu0 0.0
        %1512 = vmatpush2.msra.mxu0 0.0
        %1513 = vmatprep.subr.mxu0 0.0
        %1514 = vmatpush2.msra.mxu0 0.0
        %1515 = vmatprep.subr.mxu0 0.0
        %1516 = vmatpush2.msra.mxu0 0.0
        %1517 = vmatprep.subr.mxu0 0.0
        %1518 = vmatpush2.msra.mxu0 0.0
        %1519 = vmatprep.subr.mxu0 0.0
        %1520 = vmatpush2.msra.mxu0 0.0
        %1521 = vmatprep.subr.mxu0 0.0
        %1522 = vmatpush2.msra.mxu0 0.0
        %1523 = vmatprep.subr.mxu0 0.0
        %1524 = vmatpush2.msra.mxu0 0.0
        %1525 = vmatprep.subr.mxu0 0.0
        %1526 = vmatpush2.msra.mxu0 0.0
        %1527 = vmatprep.subr.mxu0 0.0
        %1528 = vmatpush2.msra.mxu0 0.0
        %1529 = vmatprep.subr.mxu0 0.0
        %1530 = vmatpush2.msra.mxu0 0.0
        %1531 = vmatprep.subr.mxu0 0.0
        %1532 = vmatpush2.msra.mxu0 0.0
        %1533 = vmatprep.subr.mxu0 0.0
        %1534 = vmatpush2.msra.mxu0 0.0
        %1535 = vmatprep.subr.mxu0 0.0
        %1536 = vmatpush2.msra.mxu0 0.0
        %1537 = vmatprep.subr.mxu0 0.0
        %1538 = vmatpush2.msra.mxu0 0.0
        %1539 = vmatprep.subr.mxu0 0.0
        %1540 = vmatpush2.msra.mxu0 0.0
        %1541 = vmatprep.subr.mxu0 0.0
        %1542 = vmatpush2.msra.mxu0 0.0
        %1543 = vmatprep.mubr.f32.mxu0 0.0
        %1544 = vmatmul.mubr.f32.gmra.mxu0 %v640
        %v1545 = vpop.f32.mrf.mxu0
        %v1546 = vadd.f32 0.0, %v1545
        %v1547 = vpop.f32.mrf.mxu0
        %1548 = vdwg.mxu0
        %v1549 = vadd.f32 %v1461, %v1546
        %s1550 = scalar_lea.vmem [#allocation7], 1280
        %v1551 = vld [vmem:[%s1550] sm:$0xff]
        %v1552 = vld [vmem:[%s1550 + $0x8] sm:$0xff]
        %v1553 = vld [vmem:[%s1550 + $0x10] sm:$0xff]
        %v1554 = vld [vmem:[%s1550 + $0x18] sm:$0xff]
        %v1555 = vld [vmem:[%s1550 + $0x20] sm:$0xff]
        %v1556 = vld [vmem:[%s1550 + $0x28] sm:$0xff]
        %v1557 = vld [vmem:[%s1550 + $0x30] sm:$0xff]
        %v1558 = vld [vmem:[%s1550 + $0x38] sm:$0xff]
        %v1559 = vld [vmem:[%s1550 + $0x40] sm:$0xff]
        %v1560 = vld [vmem:[%s1550 + $0x48] sm:$0xff]
        %v1561 = vld [vmem:[%s1550 + $0x50] sm:$0xff]
        %v1562 = vld [vmem:[%s1550 + $0x58] sm:$0xff]
        %v1563 = vld [vmem:[%s1550 + $0x60] sm:$0xff]
        %v1564 = vld [vmem:[%s1550 + $0x68] sm:$0xff]
        %v1565 = vld [vmem:[%s1550 + $0x70] sm:$0xff]
        %v1566 = vld [vmem:[%s1550 + $0x78] sm:$0xff]
        %1567 = vmatprep.subr.mxu0 0.0
        %1568 = vmatpush1.msra.mxu0 %v1566
        %1569 = vmatprep.subr.mxu0 0.0
        %1570 = vmatpush1.msra.mxu0 %v1565
        %1571 = vmatprep.subr.mxu0 0.0
        %1572 = vmatpush1.msra.mxu0 %v1564
        %1573 = vmatprep.subr.mxu0 0.0
        %1574 = vmatpush1.msra.mxu0 %v1563
        %1575 = vmatprep.subr.mxu0 0.0
        %1576 = vmatpush1.msra.mxu0 %v1562
        %1577 = vmatprep.subr.mxu0 0.0
        %1578 = vmatpush1.msra.mxu0 %v1561
        %1579 = vmatprep.subr.mxu0 0.0
        %1580 = vmatpush1.msra.mxu0 %v1560
        %1581 = vmatprep.subr.mxu0 0.0
        %1582 = vmatpush1.msra.mxu0 %v1559
        %1583 = vmatprep.subr.mxu0 0.0
        %1584 = vmatpush1.msra.mxu0 %v1558
        %1585 = vmatprep.subr.mxu0 0.0
        %1586 = vmatpush1.msra.mxu0 %v1557
        %1587 = vmatprep.subr.mxu0 0.0
        %1588 = vmatpush1.msra.mxu0 %v1556
        %1589 = vmatprep.subr.mxu0 0.0
        %1590 = vmatpush1.msra.mxu0 %v1555
        %1591 = vmatprep.subr.mxu0 0.0
        %1592 = vmatpush1.msra.mxu0 %v1554
        %1593 = vmatprep.subr.mxu0 0.0
        %1594 = vmatpush1.msra.mxu0 %v1553
        %1595 = vmatprep.subr.mxu0 0.0
        %1596 = vmatpush1.msra.mxu0 %v1552
        %1597 = vmatprep.subr.mxu0 0.0
        %1598 = vmatpush1.msra.mxu0 %v1551
        %1599 = vmatprep.subr.mxu0 0.0
        %1600 = vmatpush2.msra.mxu0 0.0
        %1601 = vmatprep.subr.mxu0 0.0
        %1602 = vmatpush2.msra.mxu0 0.0
        %1603 = vmatprep.subr.mxu0 0.0
        %1604 = vmatpush2.msra.mxu0 0.0
        %1605 = vmatprep.subr.mxu0 0.0
        %1606 = vmatpush2.msra.mxu0 0.0
        %1607 = vmatprep.subr.mxu0 0.0
        %1608 = vmatpush2.msra.mxu0 0.0
        %1609 = vmatprep.subr.mxu0 0.0
        %1610 = vmatpush2.msra.mxu0 0.0
        %1611 = vmatprep.subr.mxu0 0.0
        %1612 = vmatpush2.msra.mxu0 0.0
        %1613 = vmatprep.subr.mxu0 0.0
        %1614 = vmatpush2.msra.mxu0 0.0
        %1615 = vmatprep.subr.mxu0 0.0
        %1616 = vmatpush2.msra.mxu0 0.0
        %1617 = vmatprep.subr.mxu0 0.0
        %1618 = vmatpush2.msra.mxu0 0.0
        %1619 = vmatprep.subr.mxu0 0.0
        %1620 = vmatpush2.msra.mxu0 0.0
        %1621 = vmatprep.subr.mxu0 0.0
        %1622 = vmatpush2.msra.mxu0 0.0
        %1623 = vmatprep.subr.mxu0 0.0
        %1624 = vmatpush2.msra.mxu0 0.0
        %1625 = vmatprep.subr.mxu0 0.0
        %1626 = vmatpush2.msra.mxu0 0.0
        %1627 = vmatprep.subr.mxu0 0.0
        %1628 = vmatpush2.msra.mxu0 0.0
        %1629 = vmatprep.subr.mxu0 0.0
        %1630 = vmatpush2.msra.mxu0 0.0
        %1631 = vmatprep.mubr.f32.mxu0 0.0
        %1632 = vmatmul.mubr.f32.gmra.mxu0 %v645
        %v1633 = vpop.f32.mrf.mxu0
        %v1634 = vadd.f32 0.0, %v1633
        %v1635 = vpop.f32.mrf.mxu0
        %1636 = vdwg.mxu0
        %v1637 = vadd.f32 %v1549, %v1634
        %s1638 = scalar_lea.vmem [#allocation7], 1408
        %v1639 = vld [vmem:[%s1638] sm:$0xff]
        %v1640 = vld [vmem:[%s1638 + $0x8] sm:$0xff]
        %v1641 = vld [vmem:[%s1638 + $0x10] sm:$0xff]
        %v1642 = vld [vmem:[%s1638 + $0x18] sm:$0xff]
        %v1643 = vld [vmem:[%s1638 + $0x20] sm:$0xff]
        %v1644 = vld [vmem:[%s1638 + $0x28] sm:$0xff]
        %v1645 = vld [vmem:[%s1638 + $0x30] sm:$0xff]
        %v1646 = vld [vmem:[%s1638 + $0x38] sm:$0xff]
        %v1647 = vld [vmem:[%s1638 + $0x40] sm:$0xff]
        %v1648 = vld [vmem:[%s1638 + $0x48] sm:$0xff]
        %v1649 = vld [vmem:[%s1638 + $0x50] sm:$0xff]
        %v1650 = vld [vmem:[%s1638 + $0x58] sm:$0xff]
        %v1651 = vld [vmem:[%s1638 + $0x60] sm:$0xff]
        %v1652 = vld [vmem:[%s1638 + $0x68] sm:$0xff]
        %v1653 = vld [vmem:[%s1638 + $0x70] sm:$0xff]
        %v1654 = vld [vmem:[%s1638 + $0x78] sm:$0xff]
        %1655 = vmatprep.subr.mxu0 0.0
        %1656 = vmatpush1.msra.mxu0 %v1654
        %1657 = vmatprep.subr.mxu0 0.0
        %1658 = vmatpush1.msra.mxu0 %v1653
        %1659 = vmatprep.subr.mxu0 0.0
        %1660 = vmatpush1.msra.mxu0 %v1652
        %1661 = vmatprep.subr.mxu0 0.0
        %1662 = vmatpush1.msra.mxu0 %v1651
        %1663 = vmatprep.subr.mxu0 0.0
        %1664 = vmatpush1.msra.mxu0 %v1650
        %1665 = vmatprep.subr.mxu0 0.0
        %1666 = vmatpush1.msra.mxu0 %v1649
        %1667 = vmatprep.subr.mxu0 0.0
        %1668 = vmatpush1.msra.mxu0 %v1648
        %1669 = vmatprep.subr.mxu0 0.0
        %1670 = vmatpush1.msra.mxu0 %v1647
        %1671 = vmatprep.subr.mxu0 0.0
        %1672 = vmatpush1.msra.mxu0 %v1646
        %1673 = vmatprep.subr.mxu0 0.0
        %1674 = vmatpush1.msra.mxu0 %v1645
        %1675 = vmatprep.subr.mxu0 0.0
        %1676 = vmatpush1.msra.mxu0 %v1644
        %1677 = vmatprep.subr.mxu0 0.0
        %1678 = vmatpush1.msra.mxu0 %v1643
        %1679 = vmatprep.subr.mxu0 0.0
        %1680 = vmatpush1.msra.mxu0 %v1642
        %1681 = vmatprep.subr.mxu0 0.0
        %1682 = vmatpush1.msra.mxu0 %v1641
        %1683 = vmatprep.subr.mxu0 0.0
        %1684 = vmatpush1.msra.mxu0 %v1640
        %1685 = vmatprep.subr.mxu0 0.0
        %1686 = vmatpush1.msra.mxu0 %v1639
        %1687 = vmatprep.subr.mxu0 0.0
        %1688 = vmatpush2.msra.mxu0 0.0
        %1689 = vmatprep.subr.mxu0 0.0
        %1690 = vmatpush2.msra.mxu0 0.0
        %1691 = vmatprep.subr.mxu0 0.0
        %1692 = vmatpush2.msra.mxu0 0.0
        %1693 = vmatprep.subr.mxu0 0.0
        %1694 = vmatpush2.msra.mxu0 0.0
        %1695 = vmatprep.subr.mxu0 0.0
        %1696 = vmatpush2.msra.mxu0 0.0
        %1697 = vmatprep.subr.mxu0 0.0
        %1698 = vmatpush2.msra.mxu0 0.0
        %1699 = vmatprep.subr.mxu0 0.0
        %1700 = vmatpush2.msra.mxu0 0.0
        %1701 = vmatprep.subr.mxu0 0.0
        %1702 = vmatpush2.msra.mxu0 0.0
        %1703 = vmatprep.subr.mxu0 0.0
        %1704 = vmatpush2.msra.mxu0 0.0
        %1705 = vmatprep.subr.mxu0 0.0
        %1706 = vmatpush2.msra.mxu0 0.0
        %1707 = vmatprep.subr.mxu0 0.0
        %1708 = vmatpush2.msra.mxu0 0.0
        %1709 = vmatprep.subr.mxu0 0.0
        %1710 = vmatpush2.msra.mxu0 0.0
        %1711 = vmatprep.subr.mxu0 0.0
        %1712 = vmatpush2.msra.mxu0 0.0
        %1713 = vmatprep.subr.mxu0 0.0
        %1714 = vmatpush2.msra.mxu0 0.0
        %1715 = vmatprep.subr.mxu0 0.0
        %1716 = vmatpush2.msra.mxu0 0.0
        %1717 = vmatprep.subr.mxu0 0.0
        %1718 = vmatpush2.msra.mxu0 0.0
        %1719 = vmatprep.mubr.f32.mxu0 0.0
        %1720 = vmatmul.mubr.f32.gmra.mxu0 %v650
        %v1721 = vpop.f32.mrf.mxu0
        %v1722 = vadd.f32 0.0, %v1721
        %v1723 = vpop.f32.mrf.mxu0
        %1724 = vdwg.mxu0
        %v1725 = vadd.f32 %v1637, %v1722
        %s1726 = scalar_lea.vmem [#allocation7], 1536
        %v1727 = vld [vmem:[%s1726] sm:$0xff]
        %v1728 = vld [vmem:[%s1726 + $0x8] sm:$0xff]
        %v1729 = vld [vmem:[%s1726 + $0x10] sm:$0xff]
        %v1730 = vld [vmem:[%s1726 + $0x18] sm:$0xff]
        %v1731 = vld [vmem:[%s1726 + $0x20] sm:$0xff]
        %v1732 = vld [vmem:[%s1726 + $0x28] sm:$0xff]
        %v1733 = vld [vmem:[%s1726 + $0x30] sm:$0xff]
        %v1734 = vld [vmem:[%s1726 + $0x38] sm:$0xff]
        %v1735 = vld [vmem:[%s1726 + $0x40] sm:$0xff]
        %v1736 = vld [vmem:[%s1726 + $0x48] sm:$0xff]
        %v1737 = vld [vmem:[%s1726 + $0x50] sm:$0xff]
        %v1738 = vld [vmem:[%s1726 + $0x58] sm:$0xff]
        %v1739 = vld [vmem:[%s1726 + $0x60] sm:$0xff]
        %v1740 = vld [vmem:[%s1726 + $0x68] sm:$0xff]
        %v1741 = vld [vmem:[%s1726 + $0x70] sm:$0xff]
        %v1742 = vld [vmem:[%s1726 + $0x78] sm:$0xff]
        %1743 = vmatprep.subr.mxu0 0.0
        %1744 = vmatpush1.msra.mxu0 %v1742
        %1745 = vmatprep.subr.mxu0 0.0
        %1746 = vmatpush1.msra.mxu0 %v1741
        %1747 = vmatprep.subr.mxu0 0.0
        %1748 = vmatpush1.msra.mxu0 %v1740
        %1749 = vmatprep.subr.mxu0 0.0
        %1750 = vmatpush1.msra.mxu0 %v1739
        %1751 = vmatprep.subr.mxu0 0.0
        %1752 = vmatpush1.msra.mxu0 %v1738
        %1753 = vmatprep.subr.mxu0 0.0
        %1754 = vmatpush1.msra.mxu0 %v1737
        %1755 = vmatprep.subr.mxu0 0.0
        %1756 = vmatpush1.msra.mxu0 %v1736
        %1757 = vmatprep.subr.mxu0 0.0
        %1758 = vmatpush1.msra.mxu0 %v1735
        %1759 = vmatprep.subr.mxu0 0.0
        %1760 = vmatpush1.msra.mxu0 %v1734
        %1761 = vmatprep.subr.mxu0 0.0
        %1762 = vmatpush1.msra.mxu0 %v1733
        %1763 = vmatprep.subr.mxu0 0.0
        %1764 = vmatpush1.msra.mxu0 %v1732
        %1765 = vmatprep.subr.mxu0 0.0
        %1766 = vmatpush1.msra.mxu0 %v1731
        %1767 = vmatprep.subr.mxu0 0.0
        %1768 = vmatpush1.msra.mxu0 %v1730
        %1769 = vmatprep.subr.mxu0 0.0
        %1770 = vmatpush1.msra.mxu0 %v1729
        %1771 = vmatprep.subr.mxu0 0.0
        %1772 = vmatpush1.msra.mxu0 %v1728
        %1773 = vmatprep.subr.mxu0 0.0
        %1774 = vmatpush1.msra.mxu0 %v1727
        %1775 = vmatprep.subr.mxu0 0.0
        %1776 = vmatpush2.msra.mxu0 0.0
        %1777 = vmatprep.subr.mxu0 0.0
        %1778 = vmatpush2.msra.mxu0 0.0
        %1779 = vmatprep.subr.mxu0 0.0
        %1780 = vmatpush2.msra.mxu0 0.0
        %1781 = vmatprep.subr.mxu0 0.0
        %1782 = vmatpush2.msra.mxu0 0.0
        %1783 = vmatprep.subr.mxu0 0.0
        %1784 = vmatpush2.msra.mxu0 0.0
        %1785 = vmatprep.subr.mxu0 0.0
        %1786 = vmatpush2.msra.mxu0 0.0
        %1787 = vmatprep.subr.mxu0 0.0
        %1788 = vmatpush2.msra.mxu0 0.0
        %1789 = vmatprep.subr.mxu0 0.0
        %1790 = vmatpush2.msra.mxu0 0.0
        %1791 = vmatprep.subr.mxu0 0.0
        %1792 = vmatpush2.msra.mxu0 0.0
        %1793 = vmatprep.subr.mxu0 0.0
        %1794 = vmatpush2.msra.mxu0 0.0
        %1795 = vmatprep.subr.mxu0 0.0
        %1796 = vmatpush2.msra.mxu0 0.0
        %1797 = vmatprep.subr.mxu0 0.0
        %1798 = vmatpush2.msra.mxu0 0.0
        %1799 = vmatprep.subr.mxu0 0.0
        %1800 = vmatpush2.msra.mxu0 0.0
        %1801 = vmatprep.subr.mxu0 0.0
        %1802 = vmatpush2.msra.mxu0 0.0
        %1803 = vmatprep.subr.mxu0 0.0
        %1804 = vmatpush2.msra.mxu0 0.0
        %1805 = vmatprep.subr.mxu0 0.0
        %1806 = vmatpush2.msra.mxu0 0.0
        %1807 = vmatprep.mubr.f32.mxu0 0.0
        %1808 = vmatmul.mubr.f32.gmra.mxu0 %v655
        %v1809 = vpop.f32.mrf.mxu0
        %v1810 = vadd.f32 0.0, %v1809
        %v1811 = vpop.f32.mrf.mxu0
        %1812 = vdwg.mxu0
        %v1813 = vadd.f32 %v1725, %v1810
        %s1814 = scalar_lea.vmem [#allocation7], 1664
        %v1815 = vld [vmem:[%s1814] sm:$0xff]
        %v1816 = vld [vmem:[%s1814 + $0x8] sm:$0xff]
        %v1817 = vld [vmem:[%s1814 + $0x10] sm:$0xff]
        %v1818 = vld [vmem:[%s1814 + $0x18] sm:$0xff]
        %v1819 = vld [vmem:[%s1814 + $0x20] sm:$0xff]
        %v1820 = vld [vmem:[%s1814 + $0x28] sm:$0xff]
        %v1821 = vld [vmem:[%s1814 + $0x30] sm:$0xff]
        %v1822 = vld [vmem:[%s1814 + $0x38] sm:$0xff]
        %v1823 = vld [vmem:[%s1814 + $0x40] sm:$0xff]
        %v1824 = vld [vmem:[%s1814 + $0x48] sm:$0xff]
        %v1825 = vld [vmem:[%s1814 + $0x50] sm:$0xff]
        %v1826 = vld [vmem:[%s1814 + $0x58] sm:$0xff]
        %v1827 = vld [vmem:[%s1814 + $0x60] sm:$0xff]
        %v1828 = vld [vmem:[%s1814 + $0x68] sm:$0xff]
        %v1829 = vld [vmem:[%s1814 + $0x70] sm:$0xff]
        %v1830 = vld [vmem:[%s1814 + $0x78] sm:$0xff]
        %1831 = vmatprep.subr.mxu0 0.0
        %1832 = vmatpush1.msra.mxu0 %v1830
        %1833 = vmatprep.subr.mxu0 0.0
        %1834 = vmatpush1.msra.mxu0 %v1829
        %1835 = vmatprep.subr.mxu0 0.0
        %1836 = vmatpush1.msra.mxu0 %v1828
        %1837 = vmatprep.subr.mxu0 0.0
        %1838 = vmatpush1.msra.mxu0 %v1827
        %1839 = vmatprep.subr.mxu0 0.0
        %1840 = vmatpush1.msra.mxu0 %v1826
        %1841 = vmatprep.subr.mxu0 0.0
        %1842 = vmatpush1.msra.mxu0 %v1825
        %1843 = vmatprep.subr.mxu0 0.0
        %1844 = vmatpush1.msra.mxu0 %v1824
        %1845 = vmatprep.subr.mxu0 0.0
        %1846 = vmatpush1.msra.mxu0 %v1823
        %1847 = vmatprep.subr.mxu0 0.0
        %1848 = vmatpush1.msra.mxu0 %v1822
        %1849 = vmatprep.subr.mxu0 0.0
        %1850 = vmatpush1.msra.mxu0 %v1821
        %1851 = vmatprep.subr.mxu0 0.0
        %1852 = vmatpush1.msra.mxu0 %v1820
        %1853 = vmatprep.subr.mxu0 0.0
        %1854 = vmatpush1.msra.mxu0 %v1819
        %1855 = vmatprep.subr.mxu0 0.0
        %1856 = vmatpush1.msra.mxu0 %v1818
        %1857 = vmatprep.subr.mxu0 0.0
        %1858 = vmatpush1.msra.mxu0 %v1817
        %1859 = vmatprep.subr.mxu0 0.0
        %1860 = vmatpush1.msra.mxu0 %v1816
        %1861 = vmatprep.subr.mxu0 0.0
        %1862 = vmatpush1.msra.mxu0 %v1815
        %1863 = vmatprep.subr.mxu0 0.0
        %1864 = vmatpush2.msra.mxu0 0.0
        %1865 = vmatprep.subr.mxu0 0.0
        %1866 = vmatpush2.msra.mxu0 0.0
        %1867 = vmatprep.subr.mxu0 0.0
        %1868 = vmatpush2.msra.mxu0 0.0
        %1869 = vmatprep.subr.mxu0 0.0
        %1870 = vmatpush2.msra.mxu0 0.0
        %1871 = vmatprep.subr.mxu0 0.0
        %1872 = vmatpush2.msra.mxu0 0.0
        %1873 = vmatprep.subr.mxu0 0.0
        %1874 = vmatpush2.msra.mxu0 0.0
        %1875 = vmatprep.subr.mxu0 0.0
        %1876 = vmatpush2.msra.mxu0 0.0
        %1877 = vmatprep.subr.mxu0 0.0
        %1878 = vmatpush2.msra.mxu0 0.0
        %1879 = vmatprep.subr.mxu0 0.0
        %1880 = vmatpush2.msra.mxu0 0.0
        %1881 = vmatprep.subr.mxu0 0.0
        %1882 = vmatpush2.msra.mxu0 0.0
        %1883 = vmatprep.subr.mxu0 0.0
        %1884 = vmatpush2.msra.mxu0 0.0
        %1885 = vmatprep.subr.mxu0 0.0
        %1886 = vmatpush2.msra.mxu0 0.0
        %1887 = vmatprep.subr.mxu0 0.0
        %1888 = vmatpush2.msra.mxu0 0.0
        %1889 = vmatprep.subr.mxu0 0.0
        %1890 = vmatpush2.msra.mxu0 0.0
        %1891 = vmatprep.subr.mxu0 0.0
        %1892 = vmatpush2.msra.mxu0 0.0
        %1893 = vmatprep.subr.mxu0 0.0
        %1894 = vmatpush2.msra.mxu0 0.0
        %1895 = vmatprep.mubr.f32.mxu0 0.0
        %1896 = vmatmul.mubr.f32.gmra.mxu0 %v660
        %v1897 = vpop.f32.mrf.mxu0
        %v1898 = vadd.f32 0.0, %v1897
        %v1899 = vpop.f32.mrf.mxu0
        %1900 = vdwg.mxu0
        %v1901 = vadd.f32 %v1813, %v1898
        %s1902 = scalar_lea.vmem [#allocation7], 1792
        %v1903 = vld [vmem:[%s1902] sm:$0xff]
        %v1904 = vld [vmem:[%s1902 + $0x8] sm:$0xff]
        %v1905 = vld [vmem:[%s1902 + $0x10] sm:$0xff]
        %v1906 = vld [vmem:[%s1902 + $0x18] sm:$0xff]
        %v1907 = vld [vmem:[%s1902 + $0x20] sm:$0xff]
        %v1908 = vld [vmem:[%s1902 + $0x28] sm:$0xff]
        %v1909 = vld [vmem:[%s1902 + $0x30] sm:$0xff]
        %v1910 = vld [vmem:[%s1902 + $0x38] sm:$0xff]
        %v1911 = vld [vmem:[%s1902 + $0x40] sm:$0xff]
        %v1912 = vld [vmem:[%s1902 + $0x48] sm:$0xff]
        %v1913 = vld [vmem:[%s1902 + $0x50] sm:$0xff]
        %v1914 = vld [vmem:[%s1902 + $0x58] sm:$0xff]
        %v1915 = vld [vmem:[%s1902 + $0x60] sm:$0xff]
        %v1916 = vld [vmem:[%s1902 + $0x68] sm:$0xff]
        %v1917 = vld [vmem:[%s1902 + $0x70] sm:$0xff]
        %v1918 = vld [vmem:[%s1902 + $0x78] sm:$0xff]
        %1919 = vmatprep.subr.mxu0 0.0
        %1920 = vmatpush1.msra.mxu0 %v1918
        %1921 = vmatprep.subr.mxu0 0.0
        %1922 = vmatpush1.msra.mxu0 %v1917
        %1923 = vmatprep.subr.mxu0 0.0
        %1924 = vmatpush1.msra.mxu0 %v1916
        %1925 = vmatprep.subr.mxu0 0.0
        %1926 = vmatpush1.msra.mxu0 %v1915
        %1927 = vmatprep.subr.mxu0 0.0
        %1928 = vmatpush1.msra.mxu0 %v1914
        %1929 = vmatprep.subr.mxu0 0.0
        %1930 = vmatpush1.msra.mxu0 %v1913
        %1931 = vmatprep.subr.mxu0 0.0
        %1932 = vmatpush1.msra.mxu0 %v1912
        %1933 = vmatprep.subr.mxu0 0.0
        %1934 = vmatpush1.msra.mxu0 %v1911
        %1935 = vmatprep.subr.mxu0 0.0
        %1936 = vmatpush1.msra.mxu0 %v1910
        %1937 = vmatprep.subr.mxu0 0.0
        %1938 = vmatpush1.msra.mxu0 %v1909
        %1939 = vmatprep.subr.mxu0 0.0
        %1940 = vmatpush1.msra.mxu0 %v1908
        %1941 = vmatprep.subr.mxu0 0.0
        %1942 = vmatpush1.msra.mxu0 %v1907
        %1943 = vmatprep.subr.mxu0 0.0
        %1944 = vmatpush1.msra.mxu0 %v1906
        %1945 = vmatprep.subr.mxu0 0.0
        %1946 = vmatpush1.msra.mxu0 %v1905
        %1947 = vmatprep.subr.mxu0 0.0
        %1948 = vmatpush1.msra.mxu0 %v1904
        %1949 = vmatprep.subr.mxu0 0.0
        %1950 = vmatpush1.msra.mxu0 %v1903
        %1951 = vmatprep.subr.mxu0 0.0
        %1952 = vmatpush2.msra.mxu0 0.0
        %1953 = vmatprep.subr.mxu0 0.0
        %1954 = vmatpush2.msra.mxu0 0.0
        %1955 = vmatprep.subr.mxu0 0.0
        %1956 = vmatpush2.msra.mxu0 0.0
        %1957 = vmatprep.subr.mxu0 0.0
        %1958 = vmatpush2.msra.mxu0 0.0
        %1959 = vmatprep.subr.mxu0 0.0
        %1960 = vmatpush2.msra.mxu0 0.0
        %1961 = vmatprep.subr.mxu0 0.0
        %1962 = vmatpush2.msra.mxu0 0.0
        %1963 = vmatprep.subr.mxu0 0.0
        %1964 = vmatpush2.msra.mxu0 0.0
        %1965 = vmatprep.subr.mxu0 0.0
        %1966 = vmatpush2.msra.mxu0 0.0
        %1967 = vmatprep.subr.mxu0 0.0
        %1968 = vmatpush2.msra.mxu0 0.0
        %1969 = vmatprep.subr.mxu0 0.0
        %1970 = vmatpush2.msra.mxu0 0.0
        %1971 = vmatprep.subr.mxu0 0.0
        %1972 = vmatpush2.msra.mxu0 0.0
        %1973 = vmatprep.subr.mxu0 0.0
        %1974 = vmatpush2.msra.mxu0 0.0
        %1975 = vmatprep.subr.mxu0 0.0
        %1976 = vmatpush2.msra.mxu0 0.0
        %1977 = vmatprep.subr.mxu0 0.0
        %1978 = vmatpush2.msra.mxu0 0.0
        %1979 = vmatprep.subr.mxu0 0.0
        %1980 = vmatpush2.msra.mxu0 0.0
        %1981 = vmatprep.subr.mxu0 0.0
        %1982 = vmatpush2.msra.mxu0 0.0
        %1983 = vmatprep.mubr.f32.mxu0 0.0
        %1984 = vmatmul.mubr.f32.gmra.mxu0 %v665
        %v1985 = vpop.f32.mrf.mxu0
        %v1986 = vadd.f32 0.0, %v1985
        %v1987 = vpop.f32.mrf.mxu0
        %1988 = vdwg.mxu0
        %v1989 = vadd.f32 %v1901, %v1986
        %s1990 = scalar_lea.vmem [#allocation7], 1920
        %v1991 = vld [vmem:[%s1990] sm:$0xff]
        %v1992 = vld [vmem:[%s1990 + $0x8] sm:$0xff]
        %v1993 = vld [vmem:[%s1990 + $0x10] sm:$0xff]
        %v1994 = vld [vmem:[%s1990 + $0x18] sm:$0xff]
        %v1995 = vld [vmem:[%s1990 + $0x20] sm:$0xff]
        %v1996 = vld [vmem:[%s1990 + $0x28] sm:$0xff]
        %v1997 = vld [vmem:[%s1990 + $0x30] sm:$0xff]
        %v1998 = vld [vmem:[%s1990 + $0x38] sm:$0xff]
        %v1999 = vld [vmem:[%s1990 + $0x40] sm:$0xff]
        %v2000 = vld [vmem:[%s1990 + $0x48] sm:$0xff]
        %v2001 = vld [vmem:[%s1990 + $0x50] sm:$0xff]
        %v2002 = vld [vmem:[%s1990 + $0x58] sm:$0xff]
        %v2003 = vld [vmem:[%s1990 + $0x60] sm:$0xff]
        %v2004 = vld [vmem:[%s1990 + $0x68] sm:$0xff]
        %v2005 = vld [vmem:[%s1990 + $0x70] sm:$0xff]
        %v2006 = vld [vmem:[%s1990 + $0x78] sm:$0xff]
        %2007 = vmatprep.subr.mxu0 0.0
        %2008 = vmatpush1.msra.mxu0 %v2006
        %2009 = vmatprep.subr.mxu0 0.0
        %2010 = vmatpush1.msra.mxu0 %v2005
        %2011 = vmatprep.subr.mxu0 0.0
        %2012 = vmatpush1.msra.mxu0 %v2004
        %2013 = vmatprep.subr.mxu0 0.0
        %2014 = vmatpush1.msra.mxu0 %v2003
        %2015 = vmatprep.subr.mxu0 0.0
        %2016 = vmatpush1.msra.mxu0 %v2002
        %2017 = vmatprep.subr.mxu0 0.0
        %2018 = vmatpush1.msra.mxu0 %v2001
        %2019 = vmatprep.subr.mxu0 0.0
        %2020 = vmatpush1.msra.mxu0 %v2000
        %2021 = vmatprep.subr.mxu0 0.0
        %2022 = vmatpush1.msra.mxu0 %v1999
        %2023 = vmatprep.subr.mxu0 0.0
        %2024 = vmatpush1.msra.mxu0 %v1998
        %2025 = vmatprep.subr.mxu0 0.0
        %2026 = vmatpush1.msra.mxu0 %v1997
        %2027 = vmatprep.subr.mxu0 0.0
        %2028 = vmatpush1.msra.mxu0 %v1996
        %2029 = vmatprep.subr.mxu0 0.0
        %2030 = vmatpush1.msra.mxu0 %v1995
        %2031 = vmatprep.subr.mxu0 0.0
        %2032 = vmatpush1.msra.mxu0 %v1994
        %2033 = vmatprep.subr.mxu0 0.0
        %2034 = vmatpush1.msra.mxu0 %v1993
        %2035 = vmatprep.subr.mxu0 0.0
        %2036 = vmatpush1.msra.mxu0 %v1992
        %2037 = vmatprep.subr.mxu0 0.0
        %2038 = vmatpush1.msra.mxu0 %v1991
        %2039 = vmatprep.subr.mxu0 0.0
        %2040 = vmatpush2.msra.mxu0 0.0
        %2041 = vmatprep.subr.mxu0 0.0
        %2042 = vmatpush2.msra.mxu0 0.0
        %2043 = vmatprep.subr.mxu0 0.0
        %2044 = vmatpush2.msra.mxu0 0.0
        %2045 = vmatprep.subr.mxu0 0.0
        %2046 = vmatpush2.msra.mxu0 0.0
        %2047 = vmatprep.subr.mxu0 0.0
        %2048 = vmatpush2.msra.mxu0 0.0
        %2049 = vmatprep.subr.mxu0 0.0
        %2050 = vmatpush2.msra.mxu0 0.0
        %2051 = vmatprep.subr.mxu0 0.0
        %2052 = vmatpush2.msra.mxu0 0.0
        %2053 = vmatprep.subr.mxu0 0.0
        %2054 = vmatpush2.msra.mxu0 0.0
        %2055 = vmatprep.subr.mxu0 0.0
        %2056 = vmatpush2.msra.mxu0 0.0
        %2057 = vmatprep.subr.mxu0 0.0
        %2058 = vmatpush2.msra.mxu0 0.0
        %2059 = vmatprep.subr.mxu0 0.0
        %2060 = vmatpush2.msra.mxu0 0.0
        %2061 = vmatprep.subr.mxu0 0.0
        %2062 = vmatpush2.msra.mxu0 0.0
        %2063 = vmatprep.subr.mxu0 0.0
        %2064 = vmatpush2.msra.mxu0 0.0
        %2065 = vmatprep.subr.mxu0 0.0
        %2066 = vmatpush2.msra.mxu0 0.0
        %2067 = vmatprep.subr.mxu0 0.0
        %2068 = vmatpush2.msra.mxu0 0.0
        %2069 = vmatprep.subr.mxu0 0.0
        %2070 = vmatpush2.msra.mxu0 0.0
        %2071 = vmatprep.mubr.f32.mxu0 0.0
        %2072 = vmatmul.mubr.f32.gmra.mxu0 %v670
        %v2073 = vpop.f32.mrf.mxu0
        %v2074 = vadd.f32 0.0, %v2073
        %v2075 = vpop.f32.mrf.mxu0
        %2076 = vdwg.mxu0
        %v2077 = vadd.f32 %v1989, %v2074
        %v2078 = vld [vmem:[%s4] sm:$0x1]
        %v2080 = vlaneseq
        %v2081 = vshrl.u32 %v2080, 7
        %v2082 = vsub.s32 0, %v2081
        %v2083 = vrot.slane %v2078, %v2082
        %v2085 = vadd.f32 %v2077, %v2083
        %2086 = vst [vmem:[%s286] sm:$0xff] %v2085
        %p2087 = scmp.lt.s32.totalorder %s21, 1
        %s2088 = scalar_select %p2087, %s21, 1
        %s2089 = smul.addr %s2088, 8
        %s2090 = scalar_lea.vmem %s5, %s2089
        // Predicated region
        $region57: #{_forward.1} parent=39 // pred_check
          %p2091 = pneg %p149
        $region58: #{_forward.1} parent=39 // pred_check_branch
          %2093 = sbr.rel (%p2091) target = $region60
        $region59: #{_forward.1} parent=39 // pred_region
          _
        $region60: #{_forward.1} parent=39 // pred_fallthru
          _
      $region40: #{_forward.1} parent=5 // pred_fallthru
        _
      %p2094 = scmp.le.s32.totalorder 2, %s16
      // Predicated region
      $region61: #{_forward.1} parent=5 // pred_check
        %p2095 = pneg %p2094
      $region62: #{_forward.1} parent=5 // pred_check_branch
        %2097 = sbr.rel (%p2095) target = $region64
      $region63: #{_forward.1} parent=5 // pred_region
        %s2098 = ssub.s32 %s16, 2
        // Predicated region
        $region65: #{_forward.1} parent=63 // pred_check
          %p2099 = pneg %p155
        $region66: #{_forward.1} parent=63 // pred_check_branch
          %2101 = sbr.rel (%p2099) target = $region68
        $region67: #{_forward.1} parent=63 // pred_region
          %p2102 = scmp.lt.s32.totalorder %s22, 1
          %s2103 = scalar_select %p2102, %s22, 1
          %s2104 = smul.addr %s2103, 8
          %s2105 = scalar_lea.vmem %s5, %s2104
        $region68: #{_forward.1} parent=63 // pred_fallthru
          _
      $region64: #{_forward.1} parent=5 // pred_fallthru
        _
    $region6: #{_forward.1} parent=1 // loop_footer
      %s20 = sadd.s32 1, %s16
    $region7: #{_forward.1} parent=1 // loop_footer_branch
      %15 = sbr.rel target = $region3
    $region8: #{_forward.1} parent=1 // loop_exit
      _
    %2106 = vsyncpa [#allocation3], 1
    %s2107 = scalar_lea.sflag [#allocation3], 1
    %2108 = vsyncpa %s2107, 1
    %2109 = vsyncpa [#allocation5], 1
    %2110 = vsyncpa [#allocation8], 1

</llo_original>
